<compile_context>
chip_gen: v7x
topology: tpu7x:2x2x1
jax: 0.10.0
libtpu: 0.0.40
codegen_flags: <defaults>
</compile_context>

<pallas_src>
import functools

import jax
import jax.numpy as jnp
from jax import lax
from jax.experimental import pallas as pl
from jax.experimental.pallas import tpu as pltpu

NEG_MASK = -999999999.0
LN_EPS = 1e-5  # PyTorch nn.LayerNorm default eps


def transformer_kernel(x_ref, mask_ref,
                       g1_ref, b1_ref,
                       wqkv_ref, bqkv_ref,
                       wo_ref, bo_ref,
                       g2_ref, b2_ref,
                       w1_ref, bf1_ref, w2_ref, bf2_ref,
                       o_ref, *, dk, multi_num):
    x = x_ref[0]                                   # (L, F)
    mask = mask_ref[...]                           # (L, L), identical for all batches

    # ---- LayerNorm1 (pre-attention) ----
    mean = jnp.mean(x, axis=-1, keepdims=True)
    var = jnp.mean((x - mean) ** 2, axis=-1, keepdims=True)
    xn = (x - mean) * lax.rsqrt(var + LN_EPS)
    xn = xn * g1_ref[0] + b1_ref[0]

    # ---- fused Q/K/V projection for all heads (single wide matmul) ----
    qkv = jnp.dot(xn, wqkv_ref[...], preferred_element_type=jnp.float32) + bqkv_ref[0]
    HD = multi_num * dk

    # ---- multi-head self attention ----
    z_attn = None
    for h in range(multi_num):
        qh = qkv[:, h * dk:(h + 1) * dk]                     # (L, dk), already * 1/sqrt(dk)
        kh = qkv[:, HD + h * dk:HD + (h + 1) * dk]           # (L, dk)
        vh = qkv[:, 2 * HD + h * dk:2 * HD + (h + 1) * dk]   # (L, dk)
        # q @ k^T without materializing a transpose: contract the last dims.
        s = lax.dot_general(qh, kh, (((1,), (1,)), ((), ())),
                            preferred_element_type=jnp.float32) + mask
        s = s - jnp.max(s, axis=-1, keepdims=True)
        p = jnp.exp(s)
        p = p * pl.reciprocal(jnp.sum(p, axis=-1, keepdims=True), approx=True)
        zh = jnp.dot(p, vh, preferred_element_type=jnp.float32)          # (L, dk)
        # Contract this head against its (dk, F) slab of WO and accumulate:
        # equivalent to concat(z_heads, -1) @ WO, without the lane relayout.
        contrib = jnp.dot(zh, wo_ref[h], preferred_element_type=jnp.float32)
        z_attn = contrib if z_attn is None else z_attn + contrib
    z = z_attn + bo_ref[0]

    # ---- FFN block (dropout == identity in eval mode) ----
    z2 = x + z
    mean2 = jnp.mean(z2, axis=-1, keepdims=True)
    var2 = jnp.mean((z2 - mean2) ** 2, axis=-1, keepdims=True)
    zn = (z2 - mean2) * lax.rsqrt(var2 + LN_EPS)
    zn = zn * g2_ref[0] + b2_ref[0]
    h1 = jnp.dot(zn, w1_ref[...], preferred_element_type=jnp.float32) + bf1_ref[0]
    h1 = jnp.maximum(h1, 0.0)                                 # ReLU
    ffnx = jnp.dot(h1, w2_ref[...], preferred_element_type=jnp.float32) + bf2_ref[0]

    o_ref[0] = z2 + ffnx


def _build_mask(L, max_items):
    # mask[r, c] = NEG iff r <= L-2 and c >= max(r, L - max_items - 1)
    # (matches the PyTorch in-place mask construction)
    row = jnp.arange(L)[:, None]
    col = jnp.arange(L)[None, :]
    return jnp.where((row <= L - 2) & (col >= jnp.maximum(row, L - max_items - 1)),
                     jnp.float32(NEG_MASK), jnp.float32(0.0))


def preln_transformer_seq2seq(x, xlen, params, *, max_items, dk, multi_num):
    B, L, F = x.shape
    H = multi_num
    HD = H * dk
    inv_sqrt_dk = 1.0 / float(dk) ** 0.5

    # ---- wrapper-side parameter fusion (layout plumbing, outside the kernel) ----
    def flat_w(w):   # (H, F, dk) -> (F, H*dk), head-major columns
        return jnp.transpose(w, (1, 0, 2)).reshape(F, HD)

    w_q = flat_w(params["wq"]) * inv_sqrt_dk           # fold score scale into Q
    w_k = flat_w(params["wk"])
    w_v = flat_w(params["wv"])
    b_q = params["bq"].reshape(1, HD) * inv_sqrt_dk
    b_k = params["bk"].reshape(1, HD)
    b_v = params["bv"].reshape(1, HD)
    w_qkv = jnp.concatenate([w_q, w_k, w_v], axis=1)   # (F, 3*H*dk)
    b_qkv = jnp.concatenate([b_q, b_k, b_v], axis=1)   # (1, 3*H*dk)
    wo_h = params["wo"].reshape(H, dk, F)              # (H, dk, F)

    mask = _build_mask(L, max_items)                   # (L, L), batch-invariant

    kern = functools.partial(transformer_kernel, dk=dk, multi_num=H)

    args = [x, mask, params["ln1_g"], params["ln1_b"], w_qkv, b_qkv,
            wo_h, params["bo"], params["ln2_g"], params["ln2_b"],
            params["w1"], params["b1"], params["w2"], params["b2"]]

    in_specs = [pl.BlockSpec((1, L, F), lambda b: (b, 0, 0))]
    for a in args[1:]:
        # full-array blocks, constant block index -> fetched once across the grid
        in_specs.append(pl.BlockSpec(a.shape, lambda b, n=a.ndim: (0,) * n))

    # advisory cost estimate for XLA scheduling around the custom call
    flops = B * (2 * L * F * 3 * HD              # fused QKV projection
                 + H * (2 * L * L * dk) * 2      # scores + p@v
                 + H * (2 * L * dk * F)          # per-head WO contraction
                 + 2 * (2 * L * F * 4 * F))      # FFN (two matmuls)
    transcendentals = B * (H * L * L + H * L + 2 * L)
    bytes_accessed = int(sum(int(a.size) for a in args) * 4 + B * L * F * 4)

    out = pl.pallas_call(
        kern,
        out_shape=jax.ShapeDtypeStruct((B, L, F), jnp.float32),
        grid_spec=pltpu.PrefetchScalarGridSpec(
            num_scalar_prefetch=0,
            grid=(B,),
            in_specs=in_specs,
            out_specs=pl.BlockSpec((1, L, F), lambda b: (b, 0, 0)),
        ),
        compiler_params=pltpu.CompilerParams(
            dimension_semantics=("parallel",)),   # independent batch elems -> megacore
        cost_estimate=pl.CostEstimate(
            flops=int(flops),
            transcendentals=int(transcendentals),
            bytes_accessed=bytes_accessed),
    )(*args)
    return out, xlen


def init_params(key, F, dk, H):
    ks = jax.random.split(key, 12)

    def lin(k, fan_in, shape):
        bound = 1.0 / jnp.sqrt(jnp.float32(fan_in))
        return jax.random.uniform(k, shape, jnp.float32, -bound, bound)

    params = {
        "ln1_g": jnp.ones((1, F), jnp.float32),
        "ln1_b": jnp.zeros((1, F), jnp.float32),
        "wq": lin(ks[0], F, (H, F, dk)),
        "bq": lin(ks[1], F, (H, dk)),
        "wk": lin(ks[2], F, (H, F, dk)),
        "bk": lin(ks[3], F, (H, dk)),
        "wv": lin(ks[4], F, (H, F, dk)),
        "bv": lin(ks[5], F, (H, dk)),
        "wo": lin(ks[6], H * dk, (H * dk, F)),
        "bo": lin(ks[7], H * dk, (1, F)),
        "ln2_g": jnp.ones((1, F), jnp.float32),
        "ln2_b": jnp.zeros((1, F), jnp.float32),
        "w1": lin(ks[8], F, (F, 4 * F)),
        "b1": lin(ks[9], F, (1, 4 * F)),
        "w2": lin(ks[10], 4 * F, (4 * F, F)),
        "b2": lin(ks[11], 4 * F, (1, F)),
    }
    return params


def reference_forward(x, params, *, max_items, dk, multi_num):
    """Pure-JAX reference mirroring the PyTorch module (eval mode)."""
    B, L, F = x.shape

    def ln(v, g, b):
        m = jnp.mean(v, -1, keepdims=True)
        s = jnp.mean((v - m) ** 2, -1, keepdims=True)
        return (v - m) / jnp.sqrt(s + LN_EPS) * g + b

    xn = ln(x, params["ln1_g"][0], params["ln1_b"][0])
    row = jnp.arange(L)[:, None]
    col = jnp.arange(L)[None, :]
    mask = jnp.where((row <= L - 2) & (col >= jnp.maximum(row, L - max_items - 1)),
                     NEG_MASK, 0.0)
    zs = []
    for h in range(multi_num):
        q = xn @ params["wq"][h] + params["bq"][h]
        k = xn @ params["wk"][h] + params["bk"][h]
        v = xn @ params["wv"][h] + params["bv"][h]
        s = jnp.einsum("bld,bmd->blm", q, k) / jnp.sqrt(dk) + mask
        p = jax.nn.softmax(s, axis=2)
        zs.append(jnp.einsum("blm,bmd->bld", p, v))
    z = jnp.concatenate(zs, -1) @ params["wo"] + params["bo"][0]
    z2 = x + z
    zn = ln(z2, params["ln2_g"][0], params["ln2_b"][0])
    ffnx = jnp.maximum(zn @ params["w1"] + params["b1"][0], 0.0) @ params["w2"] + params["b2"][0]
    return z2 + ffnx


if __name__ == "__main__":
    B, L, F = 2, 8, 32
    dk, H, max_items = 8, 4, 4

    key = jax.random.PRNGKey(0)
    kx, kp = jax.random.split(key)
    x = jax.random.normal(kx, (B, L, F), jnp.float32)
    xlen = jnp.full((B,), L, jnp.int32)
    params = init_params(kp, F, dk, H)

    out, xlen_out = preln_transformer_seq2seq(
        x, xlen, params, max_items=max_items, dk=dk, multi_num=H)
    out = jax.block_until_ready(out)

    ref = reference_forward(x, params, max_items=max_items, dk=dk, multi_num=H)
    assert out.shape == (B, L, F)
    # Tolerance accounts for the approximate EUP reciprocal in the softmax
    # normalization (pl.reciprocal(..., approx=True)).
    assert jnp.allclose(out, ref, rtol=5e-3, atol=5e-3), "mismatch vs reference"

    print("KERNEL_OK")
</pallas_src>

<mosaic_0001>
module attributes {stable_mosaic.version = 11 : i64} {
  func.func @transformer_kernel(%arg0: i32, %arg1: memref<1x8x32xf32, #tpu.memory_space<vmem>>, %arg2: memref<8x8xf32, #tpu.memory_space<vmem>>, %arg3: memref<1x32xf32, #tpu.memory_space<vmem>>, %arg4: memref<1x32xf32, #tpu.memory_space<vmem>>, %arg5: memref<32x96xf32, #tpu.memory_space<vmem>>, %arg6: memref<1x96xf32, #tpu.memory_space<vmem>>, %arg7: memref<4x8x32xf32, #tpu.memory_space<vmem>>, %arg8: memref<1x32xf32, #tpu.memory_space<vmem>>, %arg9: memref<1x32xf32, #tpu.memory_space<vmem>>, %arg10: memref<1x32xf32, #tpu.memory_space<vmem>>, %arg11: memref<32x128xf32, #tpu.memory_space<vmem>>, %arg12: memref<1x128xf32, #tpu.memory_space<vmem>>, %arg13: memref<128x32xf32, #tpu.memory_space<vmem>>, %arg14: memref<1x32xf32, #tpu.memory_space<vmem>>, %arg15: memref<1x8x32xf32, #tpu.memory_space<vmem>>) attributes {dimension_semantics = [#tpu.dimension_semantics<parallel>], iteration_bounds = array<i64: 2>, scalar_prefetch = 0 : i64, scratch_operands = 0 : i64, tpu.core_type = #tpu.core_type<tc>, window_params = [{transform_indices = @transform_0, window_bounds = array<i64: 1, 8, 32>}, {pipeline_mode = #tpu.pipeline_mode<synchronous>, transform_indices = @transform_1, window_bounds = array<i64: 8, 8>}, {pipeline_mode = #tpu.pipeline_mode<synchronous>, transform_indices = @transform_2, window_bounds = array<i64: 1, 32>}, {pipeline_mode = #tpu.pipeline_mode<synchronous>, transform_indices = @transform_3, window_bounds = array<i64: 1, 32>}, {pipeline_mode = #tpu.pipeline_mode<synchronous>, transform_indices = @transform_4, window_bounds = array<i64: 32, 96>}, {pipeline_mode = #tpu.pipeline_mode<synchronous>, transform_indices = @transform_5, window_bounds = array<i64: 1, 96>}, {pipeline_mode = #tpu.pipeline_mode<synchronous>, transform_indices = @transform_6, window_bounds = array<i64: 4, 8, 32>}, {pipeline_mode = #tpu.pipeline_mode<synchronous>, transform_indices = @transform_7, window_bounds = array<i64: 1, 32>}, {pipeline_mode = #tpu.pipeline_mode<synchronous>, transform_indices = @transform_8, window_bounds = array<i64: 1, 32>}, {pipeline_mode = #tpu.pipeline_mode<synchronous>, transform_indices = @transform_9, window_bounds = array<i64: 1, 32>}, {pipeline_mode = #tpu.pipeline_mode<synchronous>, transform_indices = @transform_10, window_bounds = array<i64: 32, 128>}, {pipeline_mode = #tpu.pipeline_mode<synchronous>, transform_indices = @transform_11, window_bounds = array<i64: 1, 128>}, {pipeline_mode = #tpu.pipeline_mode<synchronous>, transform_indices = @transform_12, window_bounds = array<i64: 128, 32>}, {pipeline_mode = #tpu.pipeline_mode<synchronous>, transform_indices = @transform_13, window_bounds = array<i64: 1, 32>}, {transform_indices = @transform_14, window_bounds = array<i64: 1, 8, 32>}]} {
    %c0 = arith.constant 0 : index
    %c0_0 = arith.constant 0 : index
    %c0_1 = arith.constant 0 : index
    %0 = vector.load %arg1[%c0, %c0_0, %c0_1] : memref<1x8x32xf32, #tpu.memory_space<vmem>>, vector<1x8x32xf32>
    %1 = vector.shape_cast %0 : vector<1x8x32xf32> to vector<8x32xf32>
    %c0_2 = arith.constant 0 : index
    %c0_3 = arith.constant 0 : index
    %2 = vector.load %arg2[%c0_2, %c0_3] : memref<8x8xf32, #tpu.memory_space<vmem>>, vector<8x8xf32>
    %cst = arith.constant dense<0.000000e+00> : vector<8xf32>
    %3 = vector.multi_reduction <add>, %1, %cst [1] : vector<8x32xf32> to vector<8xf32>
    %4 = vector.shape_cast %3 : vector<8xf32> to vector<8x1xf32>
    %cst_4 = arith.constant 3.200000e+01 : f32
    %5 = vector.broadcast %cst_4 : f32 to vector<8x1xf32>
    %6 = arith.divf %4, %5 : vector<8x1xf32>
    %7 = vector.broadcast %6 : vector<8x1xf32> to vector<8x32xf32>
    %8 = arith.subf %1, %7 : vector<8x32xf32>
    %9 = arith.mulf %8, %8 : vector<8x32xf32>
    %cst_5 = arith.constant dense<0.000000e+00> : vector<8xf32>
    %10 = vector.multi_reduction <add>, %9, %cst_5 [1] : vector<8x32xf32> to vector<8xf32>
    %11 = vector.shape_cast %10 : vector<8xf32> to vector<8x1xf32>
    %cst_6 = arith.constant 3.200000e+01 : f32
    %12 = vector.broadcast %cst_6 : f32 to vector<8x1xf32>
    %13 = arith.divf %11, %12 : vector<8x1xf32>
    %14 = vector.broadcast %6 : vector<8x1xf32> to vector<8x32xf32>
    %15 = arith.subf %1, %14 : vector<8x32xf32>
    %cst_7 = arith.constant 9.99999974E-6 : f32
    %16 = vector.broadcast %cst_7 : f32 to vector<8x1xf32>
    %17 = arith.addf %13, %16 : vector<8x1xf32>
    %18 = math.rsqrt %17 : vector<8x1xf32>
    %19 = vector.broadcast %18 : vector<8x1xf32> to vector<8x32xf32>
    %20 = arith.mulf %15, %19 : vector<8x32xf32>
    %c0_8 = arith.constant 0 : index
    %c0_9 = arith.constant 0 : index
    %21 = vector.load %arg3[%c0_8, %c0_9] : memref<1x32xf32, #tpu.memory_space<vmem>>, vector<1x32xf32>
    %22 = vector.shape_cast %21 : vector<1x32xf32> to vector<32xf32>
    %23 = vector.shape_cast %22 : vector<32xf32> to vector<1x32xf32>
    %24 = vector.broadcast %23 : vector<1x32xf32> to vector<8x32xf32>
    %25 = arith.mulf %20, %24 : vector<8x32xf32>
    %c0_10 = arith.constant 0 : index
    %c0_11 = arith.constant 0 : index
    %26 = vector.load %arg4[%c0_10, %c0_11] : memref<1x32xf32, #tpu.memory_space<vmem>>, vector<1x32xf32>
    %27 = vector.shape_cast %26 : vector<1x32xf32> to vector<32xf32>
    %28 = vector.shape_cast %27 : vector<32xf32> to vector<1x32xf32>
    %29 = vector.broadcast %28 : vector<1x32xf32> to vector<8x32xf32>
    %30 = arith.addf %25, %29 : vector<8x32xf32>
    %c0_12 = arith.constant 0 : index
    %c0_13 = arith.constant 0 : index
    %31 = vector.load %arg5[%c0_12, %c0_13] : memref<32x96xf32, #tpu.memory_space<vmem>>, vector<32x96xf32>
    %cst_14 = arith.constant dense<0.000000e+00> : vector<8x96xf32>
    %32 = tpu.matmul %30, %31, %cst_14 {dimension_numbers = #tpu.dot_dimension_numbers<[1], [0], [0], [1], [0, 0, 1, 1], [], []>} : vector<8x32xf32>, vector<32x96xf32>, vector<8x96xf32> -> vector<8x96xf32>
    %c0_15 = arith.constant 0 : index
    %c0_16 = arith.constant 0 : index
    %33 = vector.load %arg6[%c0_15, %c0_16] : memref<1x96xf32, #tpu.memory_space<vmem>>, vector<1x96xf32>
    %34 = vector.shape_cast %33 : vector<1x96xf32> to vector<96xf32>
    %35 = vector.shape_cast %34 : vector<96xf32> to vector<1x96xf32>
    %36 = vector.broadcast %35 : vector<1x96xf32> to vector<8x96xf32>
    %37 = arith.addf %32, %36 : vector<8x96xf32>
    %38 = vector.extract_strided_slice %37 {offsets = [0, 0], sizes = [8, 8], strides = [1, 1]} : vector<8x96xf32> to vector<8x8xf32>
    %39 = vector.extract_strided_slice %37 {offsets = [0, 32], sizes = [8, 8], strides = [1, 1]} : vector<8x96xf32> to vector<8x8xf32>
    %40 = vector.extract_strided_slice %37 {offsets = [0, 64], sizes = [8, 8], strides = [1, 1]} : vector<8x96xf32> to vector<8x8xf32>
    %cst_17 = arith.constant dense<0.000000e+00> : vector<8x8xf32>
    %41 = tpu.matmul %38, %39, %cst_17 {dimension_numbers = #tpu.dot_dimension_numbers<[1], [1], [0], [0], [0, 0, 1, 0], [], []>} : vector<8x8xf32>, vector<8x8xf32>, vector<8x8xf32> -> vector<8x8xf32>
    %42 = arith.addf %41, %2 : vector<8x8xf32>
    %cst_18 = arith.constant dense<0xFF800000> : vector<8xf32>
    %43 = vector.multi_reduction <maximumf>, %42, %cst_18 [1] : vector<8x8xf32> to vector<8xf32>
    %44 = vector.shape_cast %43 : vector<8xf32> to vector<8x1xf32>
    %45 = vector.broadcast %44 : vector<8x1xf32> to vector<8x8xf32>
    %46 = arith.subf %42, %45 : vector<8x8xf32>
    %47 = math.exp %46 : vector<8x8xf32>
    %cst_19 = arith.constant dense<0.000000e+00> : vector<8xf32>
    %48 = vector.multi_reduction <add>, %47, %cst_19 [1] : vector<8x8xf32> to vector<8xf32>
    %49 = vector.shape_cast %48 : vector<8xf32> to vector<8x1xf32>
    %50 = tpu.reciprocal %49 {approx = true} : vector<8x1xf32> -> vector<8x1xf32>
    %51 = vector.broadcast %50 : vector<8x1xf32> to vector<8x8xf32>
    %52 = arith.mulf %47, %51 : vector<8x8xf32>
    %cst_20 = arith.constant dense<0.000000e+00> : vector<8x8xf32>
    %53 = tpu.matmul %52, %40, %cst_20 {dimension_numbers = #tpu.dot_dimension_numbers<[1], [0], [0], [1], [0, 0, 1, 1], [], []>} : vector<8x8xf32>, vector<8x8xf32>, vector<8x8xf32> -> vector<8x8xf32>
    %c0_21 = arith.constant 0 : index
    %c0_22 = arith.constant 0 : index
    %c0_23 = arith.constant 0 : index
    %54 = vector.load %arg7[%c0_21, %c0_22, %c0_23] : memref<4x8x32xf32, #tpu.memory_space<vmem>>, vector<1x8x32xf32>
    %55 = vector.shape_cast %54 : vector<1x8x32xf32> to vector<8x32xf32>
    %cst_24 = arith.constant dense<0.000000e+00> : vector<8x32xf32>
    %56 = tpu.matmul %53, %55, %cst_24 {dimension_numbers = #tpu.dot_dimension_numbers<[1], [0], [0], [1], [0, 0, 1, 1], [], []>} : vector<8x8xf32>, vector<8x32xf32>, vector<8x32xf32> -> vector<8x32xf32>
    %57 = vector.extract_strided_slice %37 {offsets = [0, 8], sizes = [8, 8], strides = [1, 1]} : vector<8x96xf32> to vector<8x8xf32>
    %58 = vector.extract_strided_slice %37 {offsets = [0, 40], sizes = [8, 8], strides = [1, 1]} : vector<8x96xf32> to vector<8x8xf32>
    %59 = vector.extract_strided_slice %37 {offsets = [0, 72], sizes = [8, 8], strides = [1, 1]} : vector<8x96xf32> to vector<8x8xf32>
    %cst_25 = arith.constant dense<0.000000e+00> : vector<8x8xf32>
    %60 = tpu.matmul %57, %58, %cst_25 {dimension_numbers = #tpu.dot_dimension_numbers<[1], [1], [0], [0], [0, 0, 1, 0], [], []>} : vector<8x8xf32>, vector<8x8xf32>, vector<8x8xf32> -> vector<8x8xf32>
    %61 = arith.addf %60, %2 : vector<8x8xf32>
    %cst_26 = arith.constant dense<0xFF800000> : vector<8xf32>
    %62 = vector.multi_reduction <maximumf>, %61, %cst_26 [1] : vector<8x8xf32> to vector<8xf32>
    %63 = vector.shape_cast %62 : vector<8xf32> to vector<8x1xf32>
    %64 = vector.broadcast %63 : vector<8x1xf32> to vector<8x8xf32>
    %65 = arith.subf %61, %64 : vector<8x8xf32>
    %66 = math.exp %65 : vector<8x8xf32>
    %cst_27 = arith.constant dense<0.000000e+00> : vector<8xf32>
    %67 = vector.multi_reduction <add>, %66, %cst_27 [1] : vector<8x8xf32> to vector<8xf32>
    %68 = vector.shape_cast %67 : vector<8xf32> to vector<8x1xf32>
    %69 = tpu.reciprocal %68 {approx = true} : vector<8x1xf32> -> vector<8x1xf32>
    %70 = vector.broadcast %69 : vector<8x1xf32> to vector<8x8xf32>
    %71 = arith.mulf %66, %70 : vector<8x8xf32>
    %cst_28 = arith.constant dense<0.000000e+00> : vector<8x8xf32>
    %72 = tpu.matmul %71, %59, %cst_28 {dimension_numbers = #tpu.dot_dimension_numbers<[1], [0], [0], [1], [0, 0, 1, 1], [], []>} : vector<8x8xf32>, vector<8x8xf32>, vector<8x8xf32> -> vector<8x8xf32>
    %c1 = arith.constant 1 : index
    %c0_29 = arith.constant 0 : index
    %c0_30 = arith.constant 0 : index
    %73 = vector.load %arg7[%c1, %c0_29, %c0_30] : memref<4x8x32xf32, #tpu.memory_space<vmem>>, vector<1x8x32xf32>
    %74 = vector.shape_cast %73 : vector<1x8x32xf32> to vector<8x32xf32>
    %cst_31 = arith.constant dense<0.000000e+00> : vector<8x32xf32>
    %75 = tpu.matmul %72, %74, %cst_31 {dimension_numbers = #tpu.dot_dimension_numbers<[1], [0], [0], [1], [0, 0, 1, 1], [], []>} : vector<8x8xf32>, vector<8x32xf32>, vector<8x32xf32> -> vector<8x32xf32>
    %76 = arith.addf %56, %75 : vector<8x32xf32>
    %77 = vector.extract_strided_slice %37 {offsets = [0, 16], sizes = [8, 8], strides = [1, 1]} : vector<8x96xf32> to vector<8x8xf32>
    %78 = vector.extract_strided_slice %37 {offsets = [0, 48], sizes = [8, 8], strides = [1, 1]} : vector<8x96xf32> to vector<8x8xf32>
    %79 = vector.extract_strided_slice %37 {offsets = [0, 80], sizes = [8, 8], strides = [1, 1]} : vector<8x96xf32> to vector<8x8xf32>
    %cst_32 = arith.constant dense<0.000000e+00> : vector<8x8xf32>
    %80 = tpu.matmul %77, %78, %cst_32 {dimension_numbers = #tpu.dot_dimension_numbers<[1], [1], [0], [0], [0, 0, 1, 0], [], []>} : vector<8x8xf32>, vector<8x8xf32>, vector<8x8xf32> -> vector<8x8xf32>
    %81 = arith.addf %80, %2 : vector<8x8xf32>
    %cst_33 = arith.constant dense<0xFF800000> : vector<8xf32>
    %82 = vector.multi_reduction <maximumf>, %81, %cst_33 [1] : vector<8x8xf32> to vector<8xf32>
    %83 = vector.shape_cast %82 : vector<8xf32> to vector<8x1xf32>
    %84 = vector.broadcast %83 : vector<8x1xf32> to vector<8x8xf32>
    %85 = arith.subf %81, %84 : vector<8x8xf32>
    %86 = math.exp %85 : vector<8x8xf32>
    %cst_34 = arith.constant dense<0.000000e+00> : vector<8xf32>
    %87 = vector.multi_reduction <add>, %86, %cst_34 [1] : vector<8x8xf32> to vector<8xf32>
    %88 = vector.shape_cast %87 : vector<8xf32> to vector<8x1xf32>
    %89 = tpu.reciprocal %88 {approx = true} : vector<8x1xf32> -> vector<8x1xf32>
    %90 = vector.broadcast %89 : vector<8x1xf32> to vector<8x8xf32>
    %91 = arith.mulf %86, %90 : vector<8x8xf32>
    %cst_35 = arith.constant dense<0.000000e+00> : vector<8x8xf32>
    %92 = tpu.matmul %91, %79, %cst_35 {dimension_numbers = #tpu.dot_dimension_numbers<[1], [0], [0], [1], [0, 0, 1, 1], [], []>} : vector<8x8xf32>, vector<8x8xf32>, vector<8x8xf32> -> vector<8x8xf32>
    %c2 = arith.constant 2 : index
    %c0_36 = arith.constant 0 : index
    %c0_37 = arith.constant 0 : index
    %93 = vector.load %arg7[%c2, %c0_36, %c0_37] : memref<4x8x32xf32, #tpu.memory_space<vmem>>, vector<1x8x32xf32>
    %94 = vector.shape_cast %93 : vector<1x8x32xf32> to vector<8x32xf32>
    %cst_38 = arith.constant dense<0.000000e+00> : vector<8x32xf32>
    %95 = tpu.matmul %92, %94, %cst_38 {dimension_numbers = #tpu.dot_dimension_numbers<[1], [0], [0], [1], [0, 0, 1, 1], [], []>} : vector<8x8xf32>, vector<8x32xf32>, vector<8x32xf32> -> vector<8x32xf32>
    %96 = arith.addf %76, %95 : vector<8x32xf32>
    %97 = vector.extract_strided_slice %37 {offsets = [0, 24], sizes = [8, 8], strides = [1, 1]} : vector<8x96xf32> to vector<8x8xf32>
    %98 = vector.extract_strided_slice %37 {offsets = [0, 56], sizes = [8, 8], strides = [1, 1]} : vector<8x96xf32> to vector<8x8xf32>
    %99 = vector.extract_strided_slice %37 {offsets = [0, 88], sizes = [8, 8], strides = [1, 1]} : vector<8x96xf32> to vector<8x8xf32>
    %cst_39 = arith.constant dense<0.000000e+00> : vector<8x8xf32>
    %100 = tpu.matmul %97, %98, %cst_39 {dimension_numbers = #tpu.dot_dimension_numbers<[1], [1], [0], [0], [0, 0, 1, 0], [], []>} : vector<8x8xf32>, vector<8x8xf32>, vector<8x8xf32> -> vector<8x8xf32>
    %101 = arith.addf %100, %2 : vector<8x8xf32>
    %cst_40 = arith.constant dense<0xFF800000> : vector<8xf32>
    %102 = vector.multi_reduction <maximumf>, %101, %cst_40 [1] : vector<8x8xf32> to vector<8xf32>
    %103 = vector.shape_cast %102 : vector<8xf32> to vector<8x1xf32>
    %104 = vector.broadcast %103 : vector<8x1xf32> to vector<8x8xf32>
    %105 = arith.subf %101, %104 : vector<8x8xf32>
    %106 = math.exp %105 : vector<8x8xf32>
    %cst_41 = arith.constant dense<0.000000e+00> : vector<8xf32>
    %107 = vector.multi_reduction <add>, %106, %cst_41 [1] : vector<8x8xf32> to vector<8xf32>
    %108 = vector.shape_cast %107 : vector<8xf32> to vector<8x1xf32>
    %109 = tpu.reciprocal %108 {approx = true} : vector<8x1xf32> -> vector<8x1xf32>
    %110 = vector.broadcast %109 : vector<8x1xf32> to vector<8x8xf32>
    %111 = arith.mulf %106, %110 : vector<8x8xf32>
    %cst_42 = arith.constant dense<0.000000e+00> : vector<8x8xf32>
    %112 = tpu.matmul %111, %99, %cst_42 {dimension_numbers = #tpu.dot_dimension_numbers<[1], [0], [0], [1], [0, 0, 1, 1], [], []>} : vector<8x8xf32>, vector<8x8xf32>, vector<8x8xf32> -> vector<8x8xf32>
    %c3 = arith.constant 3 : index
    %c0_43 = arith.constant 0 : index
    %c0_44 = arith.constant 0 : index
    %113 = vector.load %arg7[%c3, %c0_43, %c0_44] : memref<4x8x32xf32, #tpu.memory_space<vmem>>, vector<1x8x32xf32>
    %114 = vector.shape_cast %113 : vector<1x8x32xf32> to vector<8x32xf32>
    %cst_45 = arith.constant dense<0.000000e+00> : vector<8x32xf32>
    %115 = tpu.matmul %112, %114, %cst_45 {dimension_numbers = #tpu.dot_dimension_numbers<[1], [0], [0], [1], [0, 0, 1, 1], [], []>} : vector<8x8xf32>, vector<8x32xf32>, vector<8x32xf32> -> vector<8x32xf32>
    %116 = arith.addf %96, %115 : vector<8x32xf32>
    %c0_46 = arith.constant 0 : index
    %c0_47 = arith.constant 0 : index
    %117 = vector.load %arg8[%c0_46, %c0_47] : memref<1x32xf32, #tpu.memory_space<vmem>>, vector<1x32xf32>
    %118 = vector.shape_cast %117 : vector<1x32xf32> to vector<32xf32>
    %119 = vector.shape_cast %118 : vector<32xf32> to vector<1x32xf32>
    %120 = vector.broadcast %119 : vector<1x32xf32> to vector<8x32xf32>
    %121 = arith.addf %116, %120 : vector<8x32xf32>
    %122 = arith.addf %1, %121 : vector<8x32xf32>
    %cst_48 = arith.constant dense<0.000000e+00> : vector<8xf32>
    %123 = vector.multi_reduction <add>, %122, %cst_48 [1] : vector<8x32xf32> to vector<8xf32>
    %124 = vector.shape_cast %123 : vector<8xf32> to vector<8x1xf32>
    %cst_49 = arith.constant 3.200000e+01 : f32
    %125 = vector.broadcast %cst_49 : f32 to vector<8x1xf32>
    %126 = arith.divf %124, %125 : vector<8x1xf32>
    %127 = vector.broadcast %126 : vector<8x1xf32> to vector<8x32xf32>
    %128 = arith.subf %122, %127 : vector<8x32xf32>
    %129 = arith.mulf %128, %128 : vector<8x32xf32>
    %cst_50 = arith.constant dense<0.000000e+00> : vector<8xf32>
    %130 = vector.multi_reduction <add>, %129, %cst_50 [1] : vector<8x32xf32> to vector<8xf32>
    %131 = vector.shape_cast %130 : vector<8xf32> to vector<8x1xf32>
    %cst_51 = arith.constant 3.200000e+01 : f32
    %132 = vector.broadcast %cst_51 : f32 to vector<8x1xf32>
    %133 = arith.divf %131, %132 : vector<8x1xf32>
    %134 = vector.broadcast %126 : vector<8x1xf32> to vector<8x32xf32>
    %135 = arith.subf %122, %134 : vector<8x32xf32>
    %cst_52 = arith.constant 9.99999974E-6 : f32
    %136 = vector.broadcast %cst_52 : f32 to vector<8x1xf32>
    %137 = arith.addf %133, %136 : vector<8x1xf32>
    %138 = math.rsqrt %137 : vector<8x1xf32>
    %139 = vector.broadcast %138 : vector<8x1xf32> to vector<8x32xf32>
    %140 = arith.mulf %135, %139 : vector<8x32xf32>
    %c0_53 = arith.constant 0 : index
    %c0_54 = arith.constant 0 : index
    %141 = vector.load %arg9[%c0_53, %c0_54] : memref<1x32xf32, #tpu.memory_space<vmem>>, vector<1x32xf32>
    %142 = vector.shape_cast %141 : vector<1x32xf32> to vector<32xf32>
    %143 = vector.shape_cast %142 : vector<32xf32> to vector<1x32xf32>
    %144 = vector.broadcast %143 : vector<1x32xf32> to vector<8x32xf32>
    %145 = arith.mulf %140, %144 : vector<8x32xf32>
    %c0_55 = arith.constant 0 : index
    %c0_56 = arith.constant 0 : index
    %146 = vector.load %arg10[%c0_55, %c0_56] : memref<1x32xf32, #tpu.memory_space<vmem>>, vector<1x32xf32>
    %147 = vector.shape_cast %146 : vector<1x32xf32> to vector<32xf32>
    %148 = vector.shape_cast %147 : vector<32xf32> to vector<1x32xf32>
    %149 = vector.broadcast %148 : vector<1x32xf32> to vector<8x32xf32>
    %150 = arith.addf %145, %149 : vector<8x32xf32>
    %c0_57 = arith.constant 0 : index
    %c0_58 = arith.constant 0 : index
    %151 = vector.load %arg11[%c0_57, %c0_58] : memref<32x128xf32, #tpu.memory_space<vmem>>, vector<32x128xf32>
    %cst_59 = arith.constant dense<0.000000e+00> : vector<8x128xf32>
    %152 = tpu.matmul %150, %151, %cst_59 {dimension_numbers = #tpu.dot_dimension_numbers<[1], [0], [0], [1], [0, 0, 1, 1], [], []>} : vector<8x32xf32>, vector<32x128xf32>, vector<8x128xf32> -> vector<8x128xf32>
    %c0_60 = arith.constant 0 : index
    %c0_61 = arith.constant 0 : index
    %153 = vector.load %arg12[%c0_60, %c0_61] : memref<1x128xf32, #tpu.memory_space<vmem>>, vector<1x128xf32>
    %154 = vector.shape_cast %153 : vector<1x128xf32> to vector<128xf32>
    %155 = vector.shape_cast %154 : vector<128xf32> to vector<1x128xf32>
    %156 = vector.broadcast %155 : vector<1x128xf32> to vector<8x128xf32>
    %157 = arith.addf %152, %156 : vector<8x128xf32>
    %cst_62 = arith.constant 0.000000e+00 : f32
    %158 = vector.broadcast %cst_62 : f32 to vector<8x128xf32>
    %159 = arith.maximumf %157, %158 : vector<8x128xf32>
    %c0_63 = arith.constant 0 : index
    %c0_64 = arith.constant 0 : index
    %160 = vector.load %arg13[%c0_63, %c0_64] : memref<128x32xf32, #tpu.memory_space<vmem>>, vector<128x32xf32>
    %cst_65 = arith.constant dense<0.000000e+00> : vector<8x32xf32>
    %161 = tpu.matmul %159, %160, %cst_65 {dimension_numbers = #tpu.dot_dimension_numbers<[1], [0], [0], [1], [0, 0, 1, 1], [], []>} : vector<8x128xf32>, vector<128x32xf32>, vector<8x32xf32> -> vector<8x32xf32>
    %c0_66 = arith.constant 0 : index
    %c0_67 = arith.constant 0 : index
    %162 = vector.load %arg14[%c0_66, %c0_67] : memref<1x32xf32, #tpu.memory_space<vmem>>, vector<1x32xf32>
    %163 = vector.shape_cast %162 : vector<1x32xf32> to vector<32xf32>
    %164 = vector.shape_cast %163 : vector<32xf32> to vector<1x32xf32>
    %165 = vector.broadcast %164 : vector<1x32xf32> to vector<8x32xf32>
    %166 = arith.addf %161, %165 : vector<8x32xf32>
    %167 = arith.addf %122, %166 : vector<8x32xf32>
    %c0_68 = arith.constant 0 : index
    %c0_69 = arith.constant 0 : index
    %c0_70 = arith.constant 0 : index
    %168 = vector.load %arg15[%c0_68, %c0_69, %c0_70] : memref<1x8x32xf32, #tpu.memory_space<vmem>>, vector<1x8x32xf32>
    %169 = vector.shape_cast %168 : vector<1x8x32xf32> to vector<8x32xf32>
    %170 = vector.shape_cast %167 : vector<8x32xf32> to vector<1x8x32xf32>
    tpu.vector_store %arg15[%c0_68, %c0_69, %c0_70], %170 {strides = array<i32>} : memref<1x8x32xf32, #tpu.memory_space<vmem>>, vector<1x8x32xf32>,
    return
  }
  func.func @transform_0(%arg0: i32) -> (i32, i32, i32) {
    %c0_i32 = arith.constant 0 : i32
    %c0_i32_0 = arith.constant 0 : i32
    %c0_i32_1 = arith.constant 0 : i32
    return %arg0, %c0_i32, %c0_i32_0 : i32, i32, i32
  }
  func.func @transform_1(%arg0: i32) -> (i32, i32) {
    %c0_i32 = arith.constant 0 : i32
    %c0_i32_0 = arith.constant 0 : i32
    %c0_i32_1 = arith.constant 0 : i32
    return %c0_i32, %c0_i32_0 : i32, i32
  }
  func.func @transform_2(%arg0: i32) -> (i32, i32) {
    %c0_i32 = arith.constant 0 : i32
    %c0_i32_0 = arith.constant 0 : i32
    %c0_i32_1 = arith.constant 0 : i32
    return %c0_i32, %c0_i32_0 : i32, i32
  }
  func.func @transform_3(%arg0: i32) -> (i32, i32) {
    %c0_i32 = arith.constant 0 : i32
    %c0_i32_0 = arith.constant 0 : i32
    %c0_i32_1 = arith.constant 0 : i32
    return %c0_i32, %c0_i32_0 : i32, i32
  }
  func.func @transform_4(%arg0: i32) -> (i32, i32) {
    %c0_i32 = arith.constant 0 : i32
    %c0_i32_0 = arith.constant 0 : i32
    %c0_i32_1 = arith.constant 0 : i32
    return %c0_i32, %c0_i32_0 : i32, i32
  }
  func.func @transform_5(%arg0: i32) -> (i32, i32) {
    %c0_i32 = arith.constant 0 : i32
    %c0_i32_0 = arith.constant 0 : i32
    %c0_i32_1 = arith.constant 0 : i32
    return %c0_i32, %c0_i32_0 : i32, i32
  }
  func.func @transform_6(%arg0: i32) -> (i32, i32, i32) {
    %c0_i32 = arith.constant 0 : i32
    %c0_i32_0 = arith.constant 0 : i32
    %c0_i32_1 = arith.constant 0 : i32
    %c0_i32_2 = arith.constant 0 : i32
    return %c0_i32, %c0_i32_0, %c0_i32_1 : i32, i32, i32
  }
  func.func @transform_7(%arg0: i32) -> (i32, i32) {
    %c0_i32 = arith.constant 0 : i32
    %c0_i32_0 = arith.constant 0 : i32
    %c0_i32_1 = arith.constant 0 : i32
    return %c0_i32, %c0_i32_0 : i32, i32
  }
  func.func @transform_8(%arg0: i32) -> (i32, i32) {
    %c0_i32 = arith.constant 0 : i32
    %c0_i32_0 = arith.constant 0 : i32
    %c0_i32_1 = arith.constant 0 : i32
    return %c0_i32, %c0_i32_0 : i32, i32
  }
  func.func @transform_9(%arg0: i32) -> (i32, i32) {
    %c0_i32 = arith.constant 0 : i32
    %c0_i32_0 = arith.constant 0 : i32
    %c0_i32_1 = arith.constant 0 : i32
    return %c0_i32, %c0_i32_0 : i32, i32
  }
  func.func @transform_10(%arg0: i32) -> (i32, i32) {
    %c0_i32 = arith.constant 0 : i32
    %c0_i32_0 = arith.constant 0 : i32
    %c0_i32_1 = arith.constant 0 : i32
    return %c0_i32, %c0_i32_0 : i32, i32
  }
  func.func @transform_11(%arg0: i32) -> (i32, i32) {
    %c0_i32 = arith.constant 0 : i32
    %c0_i32_0 = arith.constant 0 : i32
    %c0_i32_1 = arith.constant 0 : i32
    return %c0_i32, %c0_i32_0 : i32, i32
  }
  func.func @transform_12(%arg0: i32) -> (i32, i32) {
    %c0_i32 = arith.constant 0 : i32
    %c0_i32_0 = arith.constant 0 : i32
    %c0_i32_1 = arith.constant 0 : i32
    return %c0_i32, %c0_i32_0 : i32, i32
  }
  func.func @transform_13(%arg0: i32) -> (i32, i32) {
    %c0_i32 = arith.constant 0 : i32
    %c0_i32_0 = arith.constant 0 : i32
    %c0_i32_1 = arith.constant 0 : i32
    return %c0_i32, %c0_i32_0 : i32, i32
  }
  func.func @transform_14(%arg0: i32) -> (i32, i32, i32) {
    %c0_i32 = arith.constant 0 : i32
    %c0_i32_0 = arith.constant 0 : i32
    %c0_i32_1 = arith.constant 0 : i32
    return %arg0, %c0_i32, %c0_i32_0 : i32, i32, i32
  }
}

</mosaic_0001>

<llo_original>
// kernel: tpu_custom_call.1
$region0: #{tpu_custom_call.1}
  #allocation0 [shape = 'u32[]', space=smem, size = 0x4, offset = 0x4, fixed_abs, tag = 'smem constant byte address 0x4 - core index']
  #allocation1 [shape = 'u32[144,128]{1,0:T(1,128)}', space=vmem, size = 0x12000, scoped, tag = 'internal scratch']
  %s0 = inlined_call_operand.vmem [shape: f32[2,8,32], index: 0, kind: input, shape index: {}]
  %s1 = inlined_call_operand.vmem [shape: f32[8,8], index: 1, kind: input, shape index: {}]
  %s2 = inlined_call_operand.vmem [shape: f32[1,32], index: 2, kind: input, shape index: {}]
  %s3 = inlined_call_operand.vmem [shape: f32[1,32], index: 3, kind: input, shape index: {}]
  %s4 = inlined_call_operand.vmem [shape: f32[32,96], index: 4, kind: input, shape index: {}]
  %s5 = inlined_call_operand.vmem [shape: f32[1,96], index: 5, kind: input, shape index: {}]
  %s6 = inlined_call_operand.vmem [shape: f32[4,8,32], index: 6, kind: input, shape index: {}]
  %s7 = inlined_call_operand.vmem [shape: f32[1,32], index: 7, kind: input, shape index: {}]
  %s8 = inlined_call_operand.vmem [shape: f32[1,32], index: 8, kind: input, shape index: {}]
  %s9 = inlined_call_operand.vmem [shape: f32[1,32], index: 9, kind: input, shape index: {}]
  %s10 = inlined_call_operand.vmem [shape: f32[32,128], index: 10, kind: input, shape index: {}]
  %s11 = inlined_call_operand.vmem [shape: f32[1,128], index: 11, kind: input, shape index: {}]
  %s12 = inlined_call_operand.vmem [shape: f32[128,32], index: 12, kind: input, shape index: {}]
  %s13 = inlined_call_operand.vmem [shape: f32[1,32], index: 13, kind: input, shape index: {}]
  %s14 = inlined_call_operand.hbm [shape: f32[2,8,32], index: 14, kind: output, shape index: {}]
  %s15 = sld [smem:[#allocation0]]
  $region89: #{tpu_custom_call.1} parent=0
    _
  %s17 = ssub.s32 1, %s15
  %s18 = scalar_select 0, %s17, %s15
  $region1: #{tpu_custom_call.1} parent=0
    #allocation2 [shape = 'u8[8192]{0}', space=vmem, size = 0x2000, scoped, tag = 'output window, operand 0']
    #allocation3 [shape = 's32[2]{0}', space=sflag, size = 0x8, scoped, tag = 'scoped memory for tpu_custom_call.1']
    %19 = vsyncpa [#allocation3], 0
    %s20 = scalar_lea.sflag [#allocation3], 1
    %21 = vsyncpa %s20, 0
    loop: start=0, step=1, limit=4
    $region2: #{tpu_custom_call.1} parent=1 // loop_pre_header
      _
    $region3: #{tpu_custom_call.1} parent=1 // loop_header
      %s23 = sphi 0, %s27
      %p24 = scmp.ge.s32.totalorder %s23, 4
      %s33 = sphi 0, %s35
      %s36 = sphi 0, %s33
      %s37 = sphi 0, %s36
      %s53 = sphi 0, %s37
      %s57 = sphi 0, %s57
      %s59 = sphi 0, %s57
      %s60 = sphi 0, %s59
      %s74 = sphi 0, %s60
      %s78 = sphi 0, %s78
      %s80 = sphi 0, %s78
      %s81 = sphi 0, %s80
      %s95 = sphi 0, %s81
      %s99 = sphi 0, %s99
      %s101 = sphi 0, %s99
      %s102 = sphi 0, %s101
      %s116 = sphi 0, %s102
      %s120 = sphi 0, %s120
      %s122 = sphi 0, %s120
      %s123 = sphi 0, %s122
      %s137 = sphi 0, %s123
      %s141 = sphi 0, %s141
      %s143 = sphi 0, %s141
      %s144 = sphi 0, %s143
      %s158 = sphi 0, %s144
      %s162 = sphi 0, %s162
      %s164 = sphi 0, %s162
      %s165 = sphi 0, %s164
      %s179 = sphi 0, %s165
      %s183 = sphi 0, %s183
      %s185 = sphi 0, %s183
      %s186 = sphi 0, %s185
      %s200 = sphi 0, %s186
      %s204 = sphi 0, %s204
      %s206 = sphi 0, %s204
      %s207 = sphi 0, %s206
      %s221 = sphi 0, %s207
      %s225 = sphi 0, %s225
      %s227 = sphi 0, %s225
      %s228 = sphi 0, %s227
      %s242 = sphi 0, %s228
      %s246 = sphi 0, %s246
      %s248 = sphi 0, %s246
      %s249 = sphi 0, %s248
      %s263 = sphi 0, %s249
      %s267 = sphi 0, %s267
      %s269 = sphi 0, %s267
      %s270 = sphi 0, %s269
      %s284 = sphi 0, %s270
      %s288 = sphi 0, %s288
      %s290 = sphi 0, %s288
      %s291 = sphi 0, %s290
      %s305 = sphi 0, %s291
      %s309 = sphi 0, %s309
      %s311 = sphi 0, %s309
      %s312 = sphi 0, %s311
      %s326 = sphi 0, %s312
      %s332 = sphi 0, %s334
      %s335 = sphi 0, %s332
      %s336 = sphi 0, %s335
      %s352 = sphi 0, %s336
    $region4: #{tpu_custom_call.1} parent=1 // loop_header_branch
      %26 = sbr.rel (%p24) target = $region8
    $region5: #{tpu_custom_call.1} parent=1 // loop_body
      %s28 = ssub.s32 %s23, 1
      %s29 = ssub.s32 %s23, 2
      %s30 = sadd.s32 %s23, 1
      %s31 = ssub.s32 %s23, %s30
      %p32 = scmp.eq.s32.totalorder %s31, 0
      %s34 = sadd.s32 %s33, 1
      %s35 = scalar_select %p32, %s33, %s34
      %p38 = pneg %p32
      %p39 = scmp.eq.s32.totalorder %s23, 1
      %p40 = por %p38, %p39
      %p41 = scmp.ne.s32.totalorder %s33, %s36
      %p42 = scmp.eq.s32.totalorder %s23, 0
      %p43 = por %p41, %p42
      %p44 = scmp.ne.s32.totalorder %s33, %s36
      %p45 = scmp.eq.s32.totalorder %s28, 1
      %p46 = por %p44, %p45
      %p47 = scmp.ne.s32.totalorder %s36, %s37
      %p48 = scmp.eq.s32.totalorder %s28, 0
      %p49 = por %p47, %p48
      %p50 = scmp.ne.s32.totalorder %s36, %s37
      %p51 = scmp.eq.s32.totalorder %s29, 1
      %p52 = por %p50, %p51
      %p54 = scmp.ne.s32.totalorder %s37, %s53
      %p55 = scmp.eq.s32.totalorder %s29, 0
      %p56 = por %p54, %p55
      %s58 = sadd.s32 %s57, 1
      %p61 = scmp.eq.s32.totalorder %s23, 1
      %p62 = scmp.ne.s32.totalorder %s57, %s59
      %p63 = scmp.eq.s32.totalorder %s23, 0
      %p64 = por %p62, %p63
      %p65 = scmp.ne.s32.totalorder %s57, %s59
      %p66 = scmp.eq.s32.totalorder %s28, 1
      %p67 = por %p65, %p66
      %p68 = scmp.ne.s32.totalorder %s59, %s60
      %p69 = scmp.eq.s32.totalorder %s28, 0
      %p70 = por %p68, %p69
      %p71 = scmp.ne.s32.totalorder %s59, %s60
      %p72 = scmp.eq.s32.totalorder %s29, 1
      %p73 = por %p71, %p72
      %p75 = scmp.ne.s32.totalorder %s60, %s74
      %p76 = scmp.eq.s32.totalorder %s29, 0
      %p77 = por %p75, %p76
      %s79 = sadd.s32 %s78, 1
      %p82 = scmp.eq.s32.totalorder %s23, 1
      %p83 = scmp.ne.s32.totalorder %s78, %s80
      %p84 = scmp.eq.s32.totalorder %s23, 0
      %p85 = por %p83, %p84
      %p86 = scmp.ne.s32.totalorder %s78, %s80
      %p87 = scmp.eq.s32.totalorder %s28, 1
      %p88 = por %p86, %p87
      %p89 = scmp.ne.s32.totalorder %s80, %s81
      %p90 = scmp.eq.s32.totalorder %s28, 0
      %p91 = por %p89, %p90
      %p92 = scmp.ne.s32.totalorder %s80, %s81
      %p93 = scmp.eq.s32.totalorder %s29, 1
      %p94 = por %p92, %p93
      %p96 = scmp.ne.s32.totalorder %s81, %s95
      %p97 = scmp.eq.s32.totalorder %s29, 0
      %p98 = por %p96, %p97
      %s100 = sadd.s32 %s99, 1
      %p103 = scmp.eq.s32.totalorder %s23, 1
      %p104 = scmp.ne.s32.totalorder %s99, %s101
      %p105 = scmp.eq.s32.totalorder %s23, 0
      %p106 = por %p104, %p105
      %p107 = scmp.ne.s32.totalorder %s99, %s101
      %p108 = scmp.eq.s32.totalorder %s28, 1
      %p109 = por %p107, %p108
      %p110 = scmp.ne.s32.totalorder %s101, %s102
      %p111 = scmp.eq.s32.totalorder %s28, 0
      %p112 = por %p110, %p111
      %p113 = scmp.ne.s32.totalorder %s101, %s102
      %p114 = scmp.eq.s32.totalorder %s29, 1
      %p115 = por %p113, %p114
      %p117 = scmp.ne.s32.totalorder %s102, %s116
      %p118 = scmp.eq.s32.totalorder %s29, 0
      %p119 = por %p117, %p118
      %s121 = sadd.s32 %s120, 1
      %p124 = scmp.eq.s32.totalorder %s23, 1
      %p125 = scmp.ne.s32.totalorder %s120, %s122
      %p126 = scmp.eq.s32.totalorder %s23, 0
      %p127 = por %p125, %p126
      %p128 = scmp.ne.s32.totalorder %s120, %s122
      %p129 = scmp.eq.s32.totalorder %s28, 1
      %p130 = por %p128, %p129
      %p131 = scmp.ne.s32.totalorder %s122, %s123
      %p132 = scmp.eq.s32.totalorder %s28, 0
      %p133 = por %p131, %p132
      %p134 = scmp.ne.s32.totalorder %s122, %s123
      %p135 = scmp.eq.s32.totalorder %s29, 1
      %p136 = por %p134, %p135
      %p138 = scmp.ne.s32.totalorder %s123, %s137
      %p139 = scmp.eq.s32.totalorder %s29, 0
      %p140 = por %p138, %p139
      %s142 = sadd.s32 %s141, 1
      %p145 = scmp.eq.s32.totalorder %s23, 1
      %p146 = scmp.ne.s32.totalorder %s141, %s143
      %p147 = scmp.eq.s32.totalorder %s23, 0
      %p148 = por %p146, %p147
      %p149 = scmp.ne.s32.totalorder %s141, %s143
      %p150 = scmp.eq.s32.totalorder %s28, 1
      %p151 = por %p149, %p150
      %p152 = scmp.ne.s32.totalorder %s143, %s144
      %p153 = scmp.eq.s32.totalorder %s28, 0
      %p154 = por %p152, %p153
      %p155 = scmp.ne.s32.totalorder %s143, %s144
      %p156 = scmp.eq.s32.totalorder %s29, 1
      %p157 = por %p155, %p156
      %p159 = scmp.ne.s32.totalorder %s144, %s158
      %p160 = scmp.eq.s32.totalorder %s29, 0
      %p161 = por %p159, %p160
      %s163 = sadd.s32 %s162, 1
      %p166 = scmp.eq.s32.totalorder %s23, 1
      %p167 = scmp.ne.s32.totalorder %s162, %s164
      %p168 = scmp.eq.s32.totalorder %s23, 0
      %p169 = por %p167, %p168
      %p170 = scmp.ne.s32.totalorder %s162, %s164
      %p171 = scmp.eq.s32.totalorder %s28, 1
      %p172 = por %p170, %p171
      %p173 = scmp.ne.s32.totalorder %s164, %s165
      %p174 = scmp.eq.s32.totalorder %s28, 0
      %p175 = por %p173, %p174
      %p176 = scmp.ne.s32.totalorder %s164, %s165
      %p177 = scmp.eq.s32.totalorder %s29, 1
      %p178 = por %p176, %p177
      %p180 = scmp.ne.s32.totalorder %s165, %s179
      %p181 = scmp.eq.s32.totalorder %s29, 0
      %p182 = por %p180, %p181
      %s184 = sadd.s32 %s183, 1
      %p187 = scmp.eq.s32.totalorder %s23, 1
      %p188 = scmp.ne.s32.totalorder %s183, %s185
      %p189 = scmp.eq.s32.totalorder %s23, 0
      %p190 = por %p188, %p189
      %p191 = scmp.ne.s32.totalorder %s183, %s185
      %p192 = scmp.eq.s32.totalorder %s28, 1
      %p193 = por %p191, %p192
      %p194 = scmp.ne.s32.totalorder %s185, %s186
      %p195 = scmp.eq.s32.totalorder %s28, 0
      %p196 = por %p194, %p195
      %p197 = scmp.ne.s32.totalorder %s185, %s186
      %p198 = scmp.eq.s32.totalorder %s29, 1
      %p199 = por %p197, %p198
      %p201 = scmp.ne.s32.totalorder %s186, %s200
      %p202 = scmp.eq.s32.totalorder %s29, 0
      %p203 = por %p201, %p202
      %s205 = sadd.s32 %s204, 1
      %p208 = scmp.eq.s32.totalorder %s23, 1
      %p209 = scmp.ne.s32.totalorder %s204, %s206
      %p210 = scmp.eq.s32.totalorder %s23, 0
      %p211 = por %p209, %p210
      %p212 = scmp.ne.s32.totalorder %s204, %s206
      %p213 = scmp.eq.s32.totalorder %s28, 1
      %p214 = por %p212, %p213
      %p215 = scmp.ne.s32.totalorder %s206, %s207
      %p216 = scmp.eq.s32.totalorder %s28, 0
      %p217 = por %p215, %p216
      %p218 = scmp.ne.s32.totalorder %s206, %s207
      %p219 = scmp.eq.s32.totalorder %s29, 1
      %p220 = por %p218, %p219
      %p222 = scmp.ne.s32.totalorder %s207, %s221
      %p223 = scmp.eq.s32.totalorder %s29, 0
      %p224 = por %p222, %p223
      %s226 = sadd.s32 %s225, 1
      %p229 = scmp.eq.s32.totalorder %s23, 1
      %p230 = scmp.ne.s32.totalorder %s225, %s227
      %p231 = scmp.eq.s32.totalorder %s23, 0
      %p232 = por %p230, %p231
      %p233 = scmp.ne.s32.totalorder %s225, %s227
      %p234 = scmp.eq.s32.totalorder %s28, 1
      %p235 = por %p233, %p234
      %p236 = scmp.ne.s32.totalorder %s227, %s228
      %p237 = scmp.eq.s32.totalorder %s28, 0
      %p238 = por %p236, %p237
      %p239 = scmp.ne.s32.totalorder %s227, %s228
      %p240 = scmp.eq.s32.totalorder %s29, 1
      %p241 = por %p239, %p240
      %p243 = scmp.ne.s32.totalorder %s228, %s242
      %p244 = scmp.eq.s32.totalorder %s29, 0
      %p245 = por %p243, %p244
      %s247 = sadd.s32 %s246, 1
      %p250 = scmp.eq.s32.totalorder %s23, 1
      %p251 = scmp.ne.s32.totalorder %s246, %s248
      %p252 = scmp.eq.s32.totalorder %s23, 0
      %p253 = por %p251, %p252
      %p254 = scmp.ne.s32.totalorder %s246, %s248
      %p255 = scmp.eq.s32.totalorder %s28, 1
      %p256 = por %p254, %p255
      %p257 = scmp.ne.s32.totalorder %s248, %s249
      %p258 = scmp.eq.s32.totalorder %s28, 0
      %p259 = por %p257, %p258
      %p260 = scmp.ne.s32.totalorder %s248, %s249
      %p261 = scmp.eq.s32.totalorder %s29, 1
      %p262 = por %p260, %p261
      %p264 = scmp.ne.s32.totalorder %s249, %s263
      %p265 = scmp.eq.s32.totalorder %s29, 0
      %p266 = por %p264, %p265
      %s268 = sadd.s32 %s267, 1
      %p271 = scmp.eq.s32.totalorder %s23, 1
      %p272 = scmp.ne.s32.totalorder %s267, %s269
      %p273 = scmp.eq.s32.totalorder %s23, 0
      %p274 = por %p272, %p273
      %p275 = scmp.ne.s32.totalorder %s267, %s269
      %p276 = scmp.eq.s32.totalorder %s28, 1
      %p277 = por %p275, %p276
      %p278 = scmp.ne.s32.totalorder %s269, %s270
      %p279 = scmp.eq.s32.totalorder %s28, 0
      %p280 = por %p278, %p279
      %p281 = scmp.ne.s32.totalorder %s269, %s270
      %p282 = scmp.eq.s32.totalorder %s29, 1
      %p283 = por %p281, %p282
      %p285 = scmp.ne.s32.totalorder %s270, %s284
      %p286 = scmp.eq.s32.totalorder %s29, 0
      %p287 = por %p285, %p286
      %s289 = sadd.s32 %s288, 1
      %p292 = scmp.eq.s32.totalorder %s23, 1
      %p293 = scmp.ne.s32.totalorder %s288, %s290
      %p294 = scmp.eq.s32.totalorder %s23, 0
      %p295 = por %p293, %p294
      %p296 = scmp.ne.s32.totalorder %s288, %s290
      %p297 = scmp.eq.s32.totalorder %s28, 1
      %p298 = por %p296, %p297
      %p299 = scmp.ne.s32.totalorder %s290, %s291
      %p300 = scmp.eq.s32.totalorder %s28, 0
      %p301 = por %p299, %p300
      %p302 = scmp.ne.s32.totalorder %s290, %s291
      %p303 = scmp.eq.s32.totalorder %s29, 1
      %p304 = por %p302, %p303
      %p306 = scmp.ne.s32.totalorder %s291, %s305
      %p307 = scmp.eq.s32.totalorder %s29, 0
      %p308 = por %p306, %p307
      %s310 = sadd.s32 %s309, 1
      %p313 = scmp.eq.s32.totalorder %s23, 1
      %p314 = scmp.ne.s32.totalorder %s309, %s311
      %p315 = scmp.eq.s32.totalorder %s23, 0
      %p316 = por %p314, %p315
      %p317 = scmp.ne.s32.totalorder %s309, %s311
      %p318 = scmp.eq.s32.totalorder %s28, 1
      %p319 = por %p317, %p318
      %p320 = scmp.ne.s32.totalorder %s311, %s312
      %p321 = scmp.eq.s32.totalorder %s28, 0
      %p322 = por %p320, %p321
      %p323 = scmp.ne.s32.totalorder %s311, %s312
      %p324 = scmp.eq.s32.totalorder %s29, 1
      %p325 = por %p323, %p324
      %p327 = scmp.ne.s32.totalorder %s312, %s326
      %p328 = scmp.eq.s32.totalorder %s29, 0
      %p329 = por %p327, %p328
      %s330 = ssub.s32 %s23, %s30
      %p331 = scmp.eq.s32.totalorder %s330, 0
      %s333 = sadd.s32 %s332, 1
      %s334 = scalar_select %p331, %s332, %s333
      %p337 = pneg %p331
      %p338 = scmp.eq.s32.totalorder %s23, 1
      %p339 = por %p337, %p338
      %p340 = scmp.ne.s32.totalorder %s332, %s335
      %p341 = scmp.eq.s32.totalorder %s23, 0
      %p342 = por %p340, %p341
      %p343 = scmp.ne.s32.totalorder %s332, %s335
      %p344 = scmp.eq.s32.totalorder %s28, 1
      %p345 = por %p343, %p344
      %p346 = scmp.ne.s32.totalorder %s335, %s336
      %p347 = scmp.eq.s32.totalorder %s28, 0
      %p348 = por %p346, %p347
      %p349 = scmp.ne.s32.totalorder %s335, %s336
      %p350 = scmp.eq.s32.totalorder %s29, 1
      %p351 = por %p349, %p350
      %p353 = scmp.ne.s32.totalorder %s336, %s352
      %p354 = scmp.eq.s32.totalorder %s29, 0
      %p355 = por %p353, %p354
      %p356 = scmp.le.s32.totalorder 1, %s23
      %p357 = scmp.lt.s32.totalorder %s23, 3
      %p358 = pnand %p356, %p357
      %p359 = pneg %p358
      // Predicated region
      $region9: #{tpu_custom_call.1} parent=5 // pred_check
        _
      $region10: #{tpu_custom_call.1} parent=5 // pred_check_branch
        %361 = sbr.rel (%p358) target = $region12
      $region11: #{tpu_custom_call.1} parent=5 // pred_region
        %s362 = ssub.s32 %s23, 1
        // Predicated region
        $region13: #{tpu_custom_call.1} parent=11 // pred_check
          %p363 = pneg %p70
        $region14: #{tpu_custom_call.1} parent=11 // pred_check_branch
          %365 = sbr.rel (%p363) target = $region16
        $region15: #{tpu_custom_call.1} parent=11 // pred_region
          _
        $region16: #{tpu_custom_call.1} parent=11 // pred_fallthru
          _
        // Predicated region
        $region17: #{tpu_custom_call.1} parent=11 // pred_check
          %p366 = pneg %p91
        $region18: #{tpu_custom_call.1} parent=11 // pred_check_branch
          %368 = sbr.rel (%p366) target = $region20
        $region19: #{tpu_custom_call.1} parent=11 // pred_region
          _
        $region20: #{tpu_custom_call.1} parent=11 // pred_fallthru
          _
        // Predicated region
        $region21: #{tpu_custom_call.1} parent=11 // pred_check
          %p369 = pneg %p112
        $region22: #{tpu_custom_call.1} parent=11 // pred_check_branch
          %371 = sbr.rel (%p369) target = $region24
        $region23: #{tpu_custom_call.1} parent=11 // pred_region
          _
        $region24: #{tpu_custom_call.1} parent=11 // pred_fallthru
          _
        // Predicated region
        $region25: #{tpu_custom_call.1} parent=11 // pred_check
          %p372 = pneg %p133
        $region26: #{tpu_custom_call.1} parent=11 // pred_check_branch
          %374 = sbr.rel (%p372) target = $region28
        $region27: #{tpu_custom_call.1} parent=11 // pred_region
          _
        $region28: #{tpu_custom_call.1} parent=11 // pred_fallthru
          _
        // Predicated region
        $region29: #{tpu_custom_call.1} parent=11 // pred_check
          %p375 = pneg %p154
        $region30: #{tpu_custom_call.1} parent=11 // pred_check_branch
          %377 = sbr.rel (%p375) target = $region32
        $region31: #{tpu_custom_call.1} parent=11 // pred_region
          _
        $region32: #{tpu_custom_call.1} parent=11 // pred_fallthru
          _
        // Predicated region
        $region33: #{tpu_custom_call.1} parent=11 // pred_check
          %p378 = pneg %p175
        $region34: #{tpu_custom_call.1} parent=11 // pred_check_branch
          %380 = sbr.rel (%p378) target = $region36
        $region35: #{tpu_custom_call.1} parent=11 // pred_region
          _
        $region36: #{tpu_custom_call.1} parent=11 // pred_fallthru
          _
        // Predicated region
        $region37: #{tpu_custom_call.1} parent=11 // pred_check
          %p381 = pneg %p196
        $region38: #{tpu_custom_call.1} parent=11 // pred_check_branch
          %383 = sbr.rel (%p381) target = $region40
        $region39: #{tpu_custom_call.1} parent=11 // pred_region
          _
        $region40: #{tpu_custom_call.1} parent=11 // pred_fallthru
          _
        // Predicated region
        $region41: #{tpu_custom_call.1} parent=11 // pred_check
          %p384 = pneg %p217
        $region42: #{tpu_custom_call.1} parent=11 // pred_check_branch
          %386 = sbr.rel (%p384) target = $region44
        $region43: #{tpu_custom_call.1} parent=11 // pred_region
          _
        $region44: #{tpu_custom_call.1} parent=11 // pred_fallthru
          _
        // Predicated region
        $region45: #{tpu_custom_call.1} parent=11 // pred_check
          %p387 = pneg %p238
        $region46: #{tpu_custom_call.1} parent=11 // pred_check_branch
          %389 = sbr.rel (%p387) target = $region48
        $region47: #{tpu_custom_call.1} parent=11 // pred_region
          _
        $region48: #{tpu_custom_call.1} parent=11 // pred_fallthru
          _
        // Predicated region
        $region49: #{tpu_custom_call.1} parent=11 // pred_check
          %p390 = pneg %p259
        $region50: #{tpu_custom_call.1} parent=11 // pred_check_branch
          %392 = sbr.rel (%p390) target = $region52
        $region51: #{tpu_custom_call.1} parent=11 // pred_region
          _
        $region52: #{tpu_custom_call.1} parent=11 // pred_fallthru
          _
        // Predicated region
        $region53: #{tpu_custom_call.1} parent=11 // pred_check
          %p393 = pneg %p280
        $region54: #{tpu_custom_call.1} parent=11 // pred_check_branch
          %395 = sbr.rel (%p393) target = $region56
        $region55: #{tpu_custom_call.1} parent=11 // pred_region
          _
        $region56: #{tpu_custom_call.1} parent=11 // pred_fallthru
          _
        // Predicated region
        $region57: #{tpu_custom_call.1} parent=11 // pred_check
          %p396 = pneg %p301
        $region58: #{tpu_custom_call.1} parent=11 // pred_check_branch
          %398 = sbr.rel (%p396) target = $region60
        $region59: #{tpu_custom_call.1} parent=11 // pred_region
          _
        $region60: #{tpu_custom_call.1} parent=11 // pred_fallthru
          _
        // Predicated region
        $region61: #{tpu_custom_call.1} parent=11 // pred_check
          %p399 = pneg %p322
        $region62: #{tpu_custom_call.1} parent=11 // pred_check_branch
          %401 = sbr.rel (%p399) target = $region64
        $region63: #{tpu_custom_call.1} parent=11 // pred_region
          _
        $region64: #{tpu_custom_call.1} parent=11 // pred_fallthru
          _
      $region12: #{tpu_custom_call.1} parent=5 // pred_fallthru
        _
      %p402 = scmp.lt.s32.totalorder %s23, 2
      // Predicated region
      $region65: #{tpu_custom_call.1} parent=5 // pred_check
        %p403 = pneg %p402
      $region66: #{tpu_custom_call.1} parent=5 // pred_check_branch
        %405 = sbr.rel (%p403) target = $region68
      $region67: #{tpu_custom_call.1} parent=5 // pred_region
        // Predicated region
        $region69: #{tpu_custom_call.1} parent=67 // pred_check
          %p406 = pneg %p43
        $region70: #{tpu_custom_call.1} parent=67 // pred_check_branch
          %408 = sbr.rel (%p406) target = $region72
        $region71: #{tpu_custom_call.1} parent=67 // pred_region
          %p409 = scmp.lt.s32.totalorder %s23, 1
          %s410 = scalar_select %p409, %s23, 1
          %s411 = smul.addr %s410, 8
          %s412 = scalar_lea.vmem %s0, %s411
        $region72: #{tpu_custom_call.1} parent=67 // pred_fallthru
          _
      $region68: #{tpu_custom_call.1} parent=5 // pred_fallthru
        _
      %p413 = scmp.le.s32.totalorder 1, %s23
      %p414 = scmp.lt.s32.totalorder %s23, 3
      %p415 = pnand %p413, %p414
      %p416 = pneg %p415
      // Predicated region
      $region73: #{tpu_custom_call.1} parent=5 // pred_check
        _
      $region74: #{tpu_custom_call.1} parent=5 // pred_check_branch
        %418 = sbr.rel (%p415) target = $region76
      $region75: #{tpu_custom_call.1} parent=5 // pred_region
        %s419 = ssub.s32 %s23, 1
        %p420 = scmp.lt.s32.totalorder %s28, 1
        %s421 = scalar_select %p420, %s28, 1
        %s422 = smul.addr %s421, 8
        %s423 = scalar_lea.vmem %s0, %s422
        %p424 = pneg %p49
        %p425 = pneg %p46
        %p426 = pneg %p70
        %p427 = pneg %p67
        %p428 = pneg %p91
        %p429 = pneg %p88
        %p430 = pneg %p112
        %p431 = pneg %p109
        %p432 = pneg %p133
        %p433 = pneg %p130
        %p434 = pneg %p154
        %p435 = pneg %p151
        %p436 = pneg %p175
        %p437 = pneg %p172
        %p438 = pneg %p196
        %p439 = pneg %p193
        %p440 = pneg %p217
        %p441 = pneg %p214
        %p442 = pneg %p238
        %p443 = pneg %p235
        %p444 = pneg %p259
        %p445 = pneg %p256
        %p446 = pneg %p280
        %p447 = pneg %p277
        %p448 = pneg %p301
        %p449 = pneg %p298
        %p450 = pneg %p322
        %p451 = pneg %p319
        %p452 = pneg %p348
        %p453 = pneg %p345
        %s454 = sand.u32 %s335, 1
        %s455 = scalar_lea.sflag [#allocation3], %s454
        %s456 = sand.u32 %s335, 1
        %s457 = smul.addr %s456, 8
        %s458 = scalar_lea.vmem [#allocation2], %s457
        %p459 = scmp.lt.s32.totalorder %s28, 1
        %s460 = scalar_select %p459, %s28, 1
        %s461 = smul.addr %s460, 8
        %s462 = scalar_lea.vmem %s0, %s461
        %v463 = vld [vmem:[%s462] sm:$0xff]
        %v464 = vld [vmem:[%s1] sm:$0xff]
        %vm465 = vcmask 261120
        %v466 = vsel %vm465, %v463, 0.0
        %467 = vadd.xlane.f32.xlu0 %v466
        %v468 = vpop.xlane.xlu0 %467
        %v469 = vrcp.pop 32.0
        %v470 = vmul.f32 %v468, %v469
        %v471 = vsub.f32 %v463, %v470
        %v472 = vmul.f32 %v471, %v471
        %v473 = vsel %vm465, %v472, 0.0
        %474 = vadd.xlane.f32.xlu0 %v473
        %v475 = vpop.xlane.xlu0 %474
        %v476 = vmul.f32 %v475, %v469
        %v477 = vadd.f32 %v476, 1e-05
        %v478 = vrsqrt.pop %v477
        %v479 = vmul.f32 %v471, %v478
        %v480 = vld [vmem:[%s2] sm:$0x1]
        %v482 = vlaneseq
        %v483 = vshrl.u32 %v482, 7
        %v484 = vsub.s32 0, %v483
        %v485 = vrot.slane %v480, %v484
        %v487 = vmul.f32 %v479, %v485
        %v488 = vld [vmem:[%s3] sm:$0x1]
        %v490 = vlaneseq
        %v491 = vshrl.u32 %v490, 7
        %v492 = vsub.s32 0, %v491
        %v493 = vrot.slane %v488, %v492
        %v495 = vadd.f32 %v487, %v493
        %v496 = vld [vmem:[%s4] sm:$0xff]
        %v497 = vld [vmem:[%s4 + $0x8] sm:$0xff]
        %v498 = vld [vmem:[%s4 + $0x10] sm:$0xff]
        %v499 = vld [vmem:[%s4 + $0x18] sm:$0xff]
        %v500 = vld [vmem:[%s5] sm:$0x1]
        %v502 = vlaneseq
        %v503 = vshrl.u32 %v502, 7
        %v504 = vsub.s32 0, %v503
        %v505 = vrot.slane %v500, %v504
        %v508 = vsel %vm465, %v495, 0
        %510 = vmatprep.subr.mxu0 0.0
        %511 = vmatpush1.msra.mxu0 %v496
        %512 = vmatprep.subr.mxu0 0.0
        %513 = vmatpush1.msra.mxu0 %v497
        %514 = vmatprep.subr.mxu0 0.0
        %515 = vmatpush1.msra.mxu0 %v498
        %516 = vmatprep.subr.mxu0 0.0
        %517 = vmatpush1.msra.mxu0 %v499
        %518 = vmatprep.subr.mxu0 0.0
        %519 = vmatpush1.msra.mxu0 0.0
        %520 = vmatprep.subr.mxu0 0.0
        %521 = vmatpush1.msra.mxu0 0.0
        %522 = vmatprep.subr.mxu0 0.0
        %523 = vmatpush1.msra.mxu0 0.0
        %524 = vmatprep.subr.mxu0 0.0
        %525 = vmatpush1.msra.mxu0 0.0
        %526 = vmatprep.subr.mxu0 0.0
        %527 = vmatpush1.msra.mxu0 0.0
        %528 = vmatprep.subr.mxu0 0.0
        %529 = vmatpush1.msra.mxu0 0.0
        %530 = vmatprep.subr.mxu0 0.0
        %531 = vmatpush1.msra.mxu0 0.0
        %532 = vmatprep.subr.mxu0 0.0
        %533 = vmatpush1.msra.mxu0 0.0
        %534 = vmatprep.subr.mxu0 0.0
        %535 = vmatpush1.msra.mxu0 0.0
        %536 = vmatprep.subr.mxu0 0.0
        %537 = vmatpush1.msra.mxu0 0.0
        %538 = vmatprep.subr.mxu0 0.0
        %539 = vmatpush1.msra.mxu0 0.0
        %540 = vmatprep.subr.mxu0 0.0
        %541 = vmatpush1.msra.mxu0 0.0
        %542 = vmatprep.subr.mxu0 0.0
        %543 = vmatpush1.msra.mxu0 0.0
        %544 = vmatprep.subr.mxu0 0.0
        %545 = vmatpush1.msra.mxu0 0.0
        %546 = vmatprep.subr.mxu0 0.0
        %547 = vmatpush1.msra.mxu0 0.0
        %548 = vmatprep.subr.mxu0 0.0
        %549 = vmatpush1.msra.mxu0 0.0
        %550 = vmatprep.subr.mxu0 0.0
        %551 = vmatpush1.msra.mxu0 0.0
        %552 = vmatprep.subr.mxu0 0.0
        %553 = vmatpush1.msra.mxu0 0.0
        %554 = vmatprep.subr.mxu0 0.0
        %555 = vmatpush1.msra.mxu0 0.0
        %556 = vmatprep.subr.mxu0 0.0
        %557 = vmatpush1.msra.mxu0 0.0
        %558 = vmatprep.subr.mxu0 0.0
        %559 = vmatpush1.msra.mxu0 0.0
        %560 = vmatprep.subr.mxu0 0.0
        %561 = vmatpush1.msra.mxu0 0.0
        %562 = vmatprep.subr.mxu0 0.0
        %563 = vmatpush1.msra.mxu0 0.0
        %564 = vmatprep.subr.mxu0 0.0
        %565 = vmatpush1.msra.mxu0 0.0
        %566 = vmatprep.subr.mxu0 0.0
        %567 = vmatpush1.msra.mxu0 0.0
        %568 = vmatprep.subr.mxu0 0.0
        %569 = vmatpush1.msra.mxu0 0.0
        %570 = vmatprep.subr.mxu0 0.0
        %571 = vmatpush1.msra.mxu0 0.0
        %572 = vmatprep.subr.mxu0 0.0
        %573 = vmatpush1.msra.mxu0 0.0
        %574 = vmatprep.mubr.f32.mxu0 0.0
        %575 = vmatmul.mubr.f32.gmra.mrb[0].mxu0 %v508
        %v576 = vpop.f32.mrb[0].mxu0
        %v577 = vadd.f32 %v505, %v576
        %v578 = vpop.f32.mrb[0].mxu0
        %579 = vdwg.mxu0
        %581 = vrot.lane.b32.xlu0 %v577, 96
        %v582 = vpop.permute.xlu0 %581
        %vm583 = vcmask 64512
        %v584 = vsel %vm583, %v577, 0
        %v586 = vsel %vm583, %v582, 0
        %588 = vmatprep.subr.mxu0 0.0
        %589 = vmatpush1.xpose.msra.mxu0 %v586
        %590 = vmatprep.subr.mxu0 0.0
        %591 = vmatpush1.xpose.msra.mxu0 0.0
        %592 = vmatprep.subr.mxu0 0.0
        %593 = vmatpush1.xpose.msra.mxu0 0.0
        %594 = vmatprep.subr.mxu0 0.0
        %595 = vmatpush1.xpose.msra.mxu0 0.0
        %596 = vmatprep.subr.mxu0 0.0
        %597 = vmatpush1.xpose.msra.mxu0 0.0
        %598 = vmatprep.subr.mxu0 0.0
        %599 = vmatpush1.xpose.msra.mxu0 0.0
        %600 = vmatprep.subr.mxu0 0.0
        %601 = vmatpush1.xpose.msra.mxu0 0.0
        %602 = vmatprep.subr.mxu0 0.0
        %603 = vmatpush1.xpose.msra.mxu0 0.0
        %604 = vmatprep.subr.mxu0 0.0
        %605 = vmatpush1.xpose.msra.mxu0 0.0
        %606 = vmatprep.subr.mxu0 0.0
        %607 = vmatpush1.xpose.msra.mxu0 0.0
        %608 = vmatprep.subr.mxu0 0.0
        %609 = vmatpush1.xpose.msra.mxu0 0.0
        %610 = vmatprep.subr.mxu0 0.0
        %611 = vmatpush1.xpose.msra.mxu0 0.0
        %612 = vmatprep.subr.mxu0 0.0
        %613 = vmatpush1.xpose.msra.mxu0 0.0
        %614 = vmatprep.subr.mxu0 0.0
        %615 = vmatpush1.xpose.msra.mxu0 0.0
        %616 = vmatprep.subr.mxu0 0.0
        %617 = vmatpush1.xpose.msra.mxu0 0.0
        %618 = vmatprep.subr.mxu0 0.0
        %619 = vmatpush1.xpose.msra.mxu0 0.0
        %620 = vmatprep.subr.mxu0 0.0
        %621 = vmatpush1.xpose.msra.mxu0 0.0
        %622 = vmatprep.subr.mxu0 0.0
        %623 = vmatpush1.xpose.msra.mxu0 0.0
        %624 = vmatprep.subr.mxu0 0.0
        %625 = vmatpush1.xpose.msra.mxu0 0.0
        %626 = vmatprep.subr.mxu0 0.0
        %627 = vmatpush1.xpose.msra.mxu0 0.0
        %628 = vmatprep.subr.mxu0 0.0
        %629 = vmatpush1.xpose.msra.mxu0 0.0
        %630 = vmatprep.subr.mxu0 0.0
        %631 = vmatpush1.xpose.msra.mxu0 0.0
        %632 = vmatprep.subr.mxu0 0.0
        %633 = vmatpush1.xpose.msra.mxu0 0.0
        %634 = vmatprep.subr.mxu0 0.0
        %635 = vmatpush1.xpose.msra.mxu0 0.0
        %636 = vmatprep.subr.mxu0 0.0
        %637 = vmatpush1.xpose.msra.mxu0 0.0
        %638 = vmatprep.subr.mxu0 0.0
        %639 = vmatpush1.xpose.msra.mxu0 0.0
        %640 = vmatprep.subr.mxu0 0.0
        %641 = vmatpush1.xpose.msra.mxu0 0.0
        %642 = vmatprep.subr.mxu0 0.0
        %643 = vmatpush1.xpose.msra.mxu0 0.0
        %644 = vmatprep.subr.mxu0 0.0
        %645 = vmatpush1.xpose.msra.mxu0 0.0
        %646 = vmatprep.subr.mxu0 0.0
        %647 = vmatpush1.xpose.msra.mxu0 0.0
        %648 = vmatprep.subr.mxu0 0.0
        %649 = vmatpush1.xpose.msra.mxu0 0.0
        %650 = vmatprep.subr.mxu0 0.0
        %651 = vmatpush1.xpose.msra.mxu0 0.0
        %652 = vmatprep.mubr.f32.mxu0 0.0
        %653 = vmatmul.mubr.f32.gmra.mrb[0].mxu0 %v584
        %v654 = vpop.f32.mrb[0].mxu0
        %v655 = vadd.f32 %v464, %v654
        %v656 = vpop.f32.mrb[0].mxu0
        %657 = vdwg.mxu0
        %v658 = vsel %vm583, %v655, -inf
        %659 = vmax.xlane.f32.xlu0 %v658
        %v660 = vpop.xlane.xlu0 %659
        %v661 = vsub.f32 %v655, %v660
        %v662 = vmul.f32 %v661, 1.442695
        %v663 = vpow.pop %v662
        %v664 = vsel %vm583, %v663, 0.0
        %665 = vadd.xlane.f32.xlu0 %v664
        %v666 = vpop.xlane.xlu0 %665
        %v667 = vrcp.pop %v666
        %v668 = vmul.f32 %v663, %v667
        %669 = vrot.lane.b32.xlu0 %v577, 64
        %v670 = vpop.permute.xlu0 %669
        %v673 = vsel %vm583, %v668, 0
        %675 = vmatprep.subr.mxu0 0.0
        %676 = vmatpush1.msra.mxu0 %v670
        %677 = vmatprep.subr.mxu0 0.0
        %678 = vmatpush1.msra.mxu0 0.0
        %679 = vmatprep.subr.mxu0 0.0
        %680 = vmatpush1.msra.mxu0 0.0
        %681 = vmatprep.subr.mxu0 0.0
        %682 = vmatpush1.msra.mxu0 0.0
        %683 = vmatprep.subr.mxu0 0.0
        %684 = vmatpush1.msra.mxu0 0.0
        %685 = vmatprep.subr.mxu0 0.0
        %686 = vmatpush1.msra.mxu0 0.0
        %687 = vmatprep.subr.mxu0 0.0
        %688 = vmatpush1.msra.mxu0 0.0
        %689 = vmatprep.subr.mxu0 0.0
        %690 = vmatpush1.msra.mxu0 0.0
        %691 = vmatprep.subr.mxu0 0.0
        %692 = vmatpush1.msra.mxu0 0.0
        %693 = vmatprep.subr.mxu0 0.0
        %694 = vmatpush1.msra.mxu0 0.0
        %695 = vmatprep.subr.mxu0 0.0
        %696 = vmatpush1.msra.mxu0 0.0
        %697 = vmatprep.subr.mxu0 0.0
        %698 = vmatpush1.msra.mxu0 0.0
        %699 = vmatprep.subr.mxu0 0.0
        %700 = vmatpush1.msra.mxu0 0.0
        %701 = vmatprep.subr.mxu0 0.0
        %702 = vmatpush1.msra.mxu0 0.0
        %703 = vmatprep.subr.mxu0 0.0
        %704 = vmatpush1.msra.mxu0 0.0
        %705 = vmatprep.subr.mxu0 0.0
        %706 = vmatpush1.msra.mxu0 0.0
        %707 = vmatprep.subr.mxu0 0.0
        %708 = vmatpush1.msra.mxu0 0.0
        %709 = vmatprep.subr.mxu0 0.0
        %710 = vmatpush1.msra.mxu0 0.0
        %711 = vmatprep.subr.mxu0 0.0
        %712 = vmatpush1.msra.mxu0 0.0
        %713 = vmatprep.subr.mxu0 0.0
        %714 = vmatpush1.msra.mxu0 0.0
        %715 = vmatprep.subr.mxu0 0.0
        %716 = vmatpush1.msra.mxu0 0.0
        %717 = vmatprep.subr.mxu0 0.0
        %718 = vmatpush1.msra.mxu0 0.0
        %719 = vmatprep.subr.mxu0 0.0
        %720 = vmatpush1.msra.mxu0 0.0
        %721 = vmatprep.subr.mxu0 0.0
        %722 = vmatpush1.msra.mxu0 0.0
        %723 = vmatprep.subr.mxu0 0.0
        %724 = vmatpush1.msra.mxu0 0.0
        %725 = vmatprep.subr.mxu0 0.0
        %726 = vmatpush1.msra.mxu0 0.0
        %727 = vmatprep.subr.mxu0 0.0
        %728 = vmatpush1.msra.mxu0 0.0
        %729 = vmatprep.subr.mxu0 0.0
        %730 = vmatpush1.msra.mxu0 0.0
        %731 = vmatprep.subr.mxu0 0.0
        %732 = vmatpush1.msra.mxu0 0.0
        %733 = vmatprep.subr.mxu0 0.0
        %734 = vmatpush1.msra.mxu0 0.0
        %735 = vmatprep.subr.mxu0 0.0
        %736 = vmatpush1.msra.mxu0 0.0
        %737 = vmatprep.subr.mxu0 0.0
        %738 = vmatpush1.msra.mxu0 0.0
        %739 = vmatprep.mubr.f32.mxu0 0.0
        %740 = vmatmul.mubr.f32.gmra.mrb[0].mxu0 %v673
        %v741 = vpop.f32.mrb[0].mxu0
        %v742 = vadd.f32 0.0, %v741
        %v743 = vpop.f32.mrb[0].mxu0
        %744 = vdwg.mxu0
        %v745 = vld [vmem:[%s6] sm:$0xff]
        %746 = vrot.lane.b32.xlu0 %v577, 120
        %v747 = vpop.permute.xlu0 %746
        %748 = vrot.lane.b32.xlu0 %v577, 88
        %v749 = vpop.permute.xlu0 %748
        %v750 = vsel %vm583, %v747, 0
        %v752 = vsel %vm583, %v749, 0
        %754 = vmatprep.subr.mxu0 0.0
        %755 = vmatpush1.xpose.msra.mxu0 %v752
        %756 = vmatprep.subr.mxu0 0.0
        %757 = vmatpush1.xpose.msra.mxu0 0.0
        %758 = vmatprep.subr.mxu0 0.0
        %759 = vmatpush1.xpose.msra.mxu0 0.0
        %760 = vmatprep.subr.mxu0 0.0
        %761 = vmatpush1.xpose.msra.mxu0 0.0
        %762 = vmatprep.subr.mxu0 0.0
        %763 = vmatpush1.xpose.msra.mxu0 0.0
        %764 = vmatprep.subr.mxu0 0.0
        %765 = vmatpush1.xpose.msra.mxu0 0.0
        %766 = vmatprep.subr.mxu0 0.0
        %767 = vmatpush1.xpose.msra.mxu0 0.0
        %768 = vmatprep.subr.mxu0 0.0
        %769 = vmatpush1.xpose.msra.mxu0 0.0
        %770 = vmatprep.subr.mxu0 0.0
        %771 = vmatpush1.xpose.msra.mxu0 0.0
        %772 = vmatprep.subr.mxu0 0.0
        %773 = vmatpush1.xpose.msra.mxu0 0.0
        %774 = vmatprep.subr.mxu0 0.0
        %775 = vmatpush1.xpose.msra.mxu0 0.0
        %776 = vmatprep.subr.mxu0 0.0
        %777 = vmatpush1.xpose.msra.mxu0 0.0
        %778 = vmatprep.subr.mxu0 0.0
        %779 = vmatpush1.xpose.msra.mxu0 0.0
        %780 = vmatprep.subr.mxu0 0.0
        %781 = vmatpush1.xpose.msra.mxu0 0.0
        %782 = vmatprep.subr.mxu0 0.0
        %783 = vmatpush1.xpose.msra.mxu0 0.0
        %784 = vmatprep.subr.mxu0 0.0
        %785 = vmatpush1.xpose.msra.mxu0 0.0
        %786 = vmatprep.subr.mxu0 0.0
        %787 = vmatpush1.xpose.msra.mxu0 0.0
        %788 = vmatprep.subr.mxu0 0.0
        %789 = vmatpush1.xpose.msra.mxu0 0.0
        %790 = vmatprep.subr.mxu0 0.0
        %791 = vmatpush1.xpose.msra.mxu0 0.0
        %792 = vmatprep.subr.mxu0 0.0
        %793 = vmatpush1.xpose.msra.mxu0 0.0
        %794 = vmatprep.subr.mxu0 0.0
        %795 = vmatpush1.xpose.msra.mxu0 0.0
        %796 = vmatprep.subr.mxu0 0.0
        %797 = vmatpush1.xpose.msra.mxu0 0.0
        %798 = vmatprep.subr.mxu0 0.0
        %799 = vmatpush1.xpose.msra.mxu0 0.0
        %800 = vmatprep.subr.mxu0 0.0
        %801 = vmatpush1.xpose.msra.mxu0 0.0
        %802 = vmatprep.subr.mxu0 0.0
        %803 = vmatpush1.xpose.msra.mxu0 0.0
        %804 = vmatprep.subr.mxu0 0.0
        %805 = vmatpush1.xpose.msra.mxu0 0.0
        %806 = vmatprep.subr.mxu0 0.0
        %807 = vmatpush1.xpose.msra.mxu0 0.0
        %808 = vmatprep.subr.mxu0 0.0
        %809 = vmatpush1.xpose.msra.mxu0 0.0
        %810 = vmatprep.subr.mxu0 0.0
        %811 = vmatpush1.xpose.msra.mxu0 0.0
        %812 = vmatprep.subr.mxu0 0.0
        %813 = vmatpush1.xpose.msra.mxu0 0.0
        %814 = vmatprep.subr.mxu0 0.0
        %815 = vmatpush1.xpose.msra.mxu0 0.0
        %816 = vmatprep.subr.mxu0 0.0
        %817 = vmatpush1.xpose.msra.mxu0 0.0
        %818 = vmatprep.mubr.f32.mxu0 0.0
        %819 = vmatmul.mubr.f32.gmra.mrb[0].mxu0 %v750
        %v820 = vpop.f32.mrb[0].mxu0
        %v821 = vadd.f32 %v464, %v820
        %v822 = vpop.f32.mrb[0].mxu0
        %823 = vdwg.mxu0
        %v824 = vsel %vm583, %v821, -inf
        %825 = vmax.xlane.f32.xlu0 %v824
        %v826 = vpop.xlane.xlu0 %825
        %v827 = vsub.f32 %v821, %v826
        %v828 = vmul.f32 %v827, 1.442695
        %v829 = vpow.pop %v828
        %v830 = vsel %vm583, %v829, 0.0
        %831 = vadd.xlane.f32.xlu0 %v830
        %v832 = vpop.xlane.xlu0 %831
        %v833 = vrcp.pop %v832
        %v834 = vmul.f32 %v829, %v833
        %835 = vrot.lane.b32.xlu0 %v577, 56
        %v836 = vpop.permute.xlu0 %835
        %v839 = vsel %vm583, %v834, 0
        %841 = vmatprep.subr.mxu0 0.0
        %842 = vmatpush1.msra.mxu0 %v836
        %843 = vmatprep.subr.mxu0 0.0
        %844 = vmatpush1.msra.mxu0 0.0
        %845 = vmatprep.subr.mxu0 0.0
        %846 = vmatpush1.msra.mxu0 0.0
        %847 = vmatprep.subr.mxu0 0.0
        %848 = vmatpush1.msra.mxu0 0.0
        %849 = vmatprep.subr.mxu0 0.0
        %850 = vmatpush1.msra.mxu0 0.0
        %851 = vmatprep.subr.mxu0 0.0
        %852 = vmatpush1.msra.mxu0 0.0
        %853 = vmatprep.subr.mxu0 0.0
        %854 = vmatpush1.msra.mxu0 0.0
        %855 = vmatprep.subr.mxu0 0.0
        %856 = vmatpush1.msra.mxu0 0.0
        %857 = vmatprep.subr.mxu0 0.0
        %858 = vmatpush1.msra.mxu0 0.0
        %859 = vmatprep.subr.mxu0 0.0
        %860 = vmatpush1.msra.mxu0 0.0
        %861 = vmatprep.subr.mxu0 0.0
        %862 = vmatpush1.msra.mxu0 0.0
        %863 = vmatprep.subr.mxu0 0.0
        %864 = vmatpush1.msra.mxu0 0.0
        %865 = vmatprep.subr.mxu0 0.0
        %866 = vmatpush1.msra.mxu0 0.0
        %867 = vmatprep.subr.mxu0 0.0
        %868 = vmatpush1.msra.mxu0 0.0
        %869 = vmatprep.subr.mxu0 0.0
        %870 = vmatpush1.msra.mxu0 0.0
        %871 = vmatprep.subr.mxu0 0.0
        %872 = vmatpush1.msra.mxu0 0.0
        %873 = vmatprep.subr.mxu0 0.0
        %874 = vmatpush1.msra.mxu0 0.0
        %875 = vmatprep.subr.mxu0 0.0
        %876 = vmatpush1.msra.mxu0 0.0
        %877 = vmatprep.subr.mxu0 0.0
        %878 = vmatpush1.msra.mxu0 0.0
        %879 = vmatprep.subr.mxu0 0.0
        %880 = vmatpush1.msra.mxu0 0.0
        %881 = vmatprep.subr.mxu0 0.0
        %882 = vmatpush1.msra.mxu0 0.0
        %883 = vmatprep.subr.mxu0 0.0
        %884 = vmatpush1.msra.mxu0 0.0
        %885 = vmatprep.subr.mxu0 0.0
        %886 = vmatpush1.msra.mxu0 0.0
        %887 = vmatprep.subr.mxu0 0.0
        %888 = vmatpush1.msra.mxu0 0.0
        %889 = vmatprep.subr.mxu0 0.0
        %890 = vmatpush1.msra.mxu0 0.0
        %891 = vmatprep.subr.mxu0 0.0
        %892 = vmatpush1.msra.mxu0 0.0
        %893 = vmatprep.subr.mxu0 0.0
        %894 = vmatpush1.msra.mxu0 0.0
        %895 = vmatprep.subr.mxu0 0.0
        %896 = vmatpush1.msra.mxu0 0.0
        %897 = vmatprep.subr.mxu0 0.0
        %898 = vmatpush1.msra.mxu0 0.0
        %899 = vmatprep.subr.mxu0 0.0
        %900 = vmatpush1.msra.mxu0 0.0
        %901 = vmatprep.subr.mxu0 0.0
        %902 = vmatpush1.msra.mxu0 0.0
        %903 = vmatprep.subr.mxu0 0.0
        %904 = vmatpush1.msra.mxu0 0.0
        %905 = vmatprep.mubr.f32.mxu0 0.0
        %906 = vmatmul.mubr.f32.gmra.mrb[0].mxu0 %v839
        %v907 = vpop.f32.mrb[0].mxu0
        %v908 = vadd.f32 0.0, %v907
        %v909 = vpop.f32.mrb[0].mxu0
        %910 = vdwg.mxu0
        %s911 = scalar_lea.vmem %s6, 8
        %v912 = vld [vmem:[%s911] sm:$0xff]
        %v914 = vsel %vm583, %v908, 0
        %916 = vmatprep.subr.mxu0 0.0
        %917 = vmatpush1.msra.mxu0 %v912
        %918 = vmatprep.subr.mxu0 0.0
        %919 = vmatpush1.msra.mxu0 0.0
        %920 = vmatprep.subr.mxu0 0.0
        %921 = vmatpush1.msra.mxu0 0.0
        %922 = vmatprep.subr.mxu0 0.0
        %923 = vmatpush1.msra.mxu0 0.0
        %924 = vmatprep.subr.mxu0 0.0
        %925 = vmatpush1.msra.mxu0 0.0
        %926 = vmatprep.subr.mxu0 0.0
        %927 = vmatpush1.msra.mxu0 0.0
        %928 = vmatprep.subr.mxu0 0.0
        %929 = vmatpush1.msra.mxu0 0.0
        %930 = vmatprep.subr.mxu0 0.0
        %931 = vmatpush1.msra.mxu0 0.0
        %932 = vmatprep.subr.mxu0 0.0
        %933 = vmatpush1.msra.mxu0 0.0
        %934 = vmatprep.subr.mxu0 0.0
        %935 = vmatpush1.msra.mxu0 0.0
        %936 = vmatprep.subr.mxu0 0.0
        %937 = vmatpush1.msra.mxu0 0.0
        %938 = vmatprep.subr.mxu0 0.0
        %939 = vmatpush1.msra.mxu0 0.0
        %940 = vmatprep.subr.mxu0 0.0
        %941 = vmatpush1.msra.mxu0 0.0
        %942 = vmatprep.subr.mxu0 0.0
        %943 = vmatpush1.msra.mxu0 0.0
        %944 = vmatprep.subr.mxu0 0.0
        %945 = vmatpush1.msra.mxu0 0.0
        %946 = vmatprep.subr.mxu0 0.0
        %947 = vmatpush1.msra.mxu0 0.0
        %948 = vmatprep.subr.mxu0 0.0
        %949 = vmatpush1.msra.mxu0 0.0
        %950 = vmatprep.subr.mxu0 0.0
        %951 = vmatpush1.msra.mxu0 0.0
        %952 = vmatprep.subr.mxu0 0.0
        %953 = vmatpush1.msra.mxu0 0.0
        %954 = vmatprep.subr.mxu0 0.0
        %955 = vmatpush1.msra.mxu0 0.0
        %956 = vmatprep.subr.mxu0 0.0
        %957 = vmatpush1.msra.mxu0 0.0
        %958 = vmatprep.subr.mxu0 0.0
        %959 = vmatpush1.msra.mxu0 0.0
        %960 = vmatprep.subr.mxu0 0.0
        %961 = vmatpush1.msra.mxu0 0.0
        %962 = vmatprep.subr.mxu0 0.0
        %963 = vmatpush1.msra.mxu0 0.0
        %964 = vmatprep.subr.mxu0 0.0
        %965 = vmatpush1.msra.mxu0 0.0
        %966 = vmatprep.subr.mxu0 0.0
        %967 = vmatpush1.msra.mxu0 0.0
        %968 = vmatprep.subr.mxu0 0.0
        %969 = vmatpush1.msra.mxu0 0.0
        %970 = vmatprep.subr.mxu0 0.0
        %971 = vmatpush1.msra.mxu0 0.0
        %972 = vmatprep.subr.mxu0 0.0
        %973 = vmatpush1.msra.mxu0 0.0
        %974 = vmatprep.subr.mxu0 0.0
        %975 = vmatpush1.msra.mxu0 0.0
        %976 = vmatprep.subr.mxu0 0.0
        %977 = vmatpush1.msra.mxu0 0.0
        %978 = vmatprep.subr.mxu0 0.0
        %979 = vmatpush1.msra.mxu0 0.0
        %980 = vmatprep.mubr.f32.mxu0 0.0
        %981 = vmatmul.mubr.f32.gmra.mrb[0].mxu0 %v914
        %v982 = vpop.f32.mrb[0].mxu0
        %v983 = vadd.f32 0.0, %v982
        %v984 = vpop.f32.mrb[0].mxu0
        %985 = vdwg.mxu0
        %v987 = vsel %vm583, %v742, 0
        %989 = vmatprep.subr.mxu0 0.0
        %990 = vmatpush1.msra.mxu0 %v745
        %991 = vmatprep.subr.mxu0 0.0
        %992 = vmatpush1.msra.mxu0 0.0
        %993 = vmatprep.subr.mxu0 0.0
        %994 = vmatpush1.msra.mxu0 0.0
        %995 = vmatprep.subr.mxu0 0.0
        %996 = vmatpush1.msra.mxu0 0.0
        %997 = vmatprep.subr.mxu0 0.0
        %998 = vmatpush1.msra.mxu0 0.0
        %999 = vmatprep.subr.mxu0 0.0
        %1000 = vmatpush1.msra.mxu0 0.0
        %1001 = vmatprep.subr.mxu0 0.0
        %1002 = vmatpush1.msra.mxu0 0.0
        %1003 = vmatprep.subr.mxu0 0.0
        %1004 = vmatpush1.msra.mxu0 0.0
        %1005 = vmatprep.subr.mxu0 0.0
        %1006 = vmatpush1.msra.mxu0 0.0
        %1007 = vmatprep.subr.mxu0 0.0
        %1008 = vmatpush1.msra.mxu0 0.0
        %1009 = vmatprep.subr.mxu0 0.0
        %1010 = vmatpush1.msra.mxu0 0.0
        %1011 = vmatprep.subr.mxu0 0.0
        %1012 = vmatpush1.msra.mxu0 0.0
        %1013 = vmatprep.subr.mxu0 0.0
        %1014 = vmatpush1.msra.mxu0 0.0
        %1015 = vmatprep.subr.mxu0 0.0
        %1016 = vmatpush1.msra.mxu0 0.0
        %1017 = vmatprep.subr.mxu0 0.0
        %1018 = vmatpush1.msra.mxu0 0.0
        %1019 = vmatprep.subr.mxu0 0.0
        %1020 = vmatpush1.msra.mxu0 0.0
        %1021 = vmatprep.subr.mxu0 0.0
        %1022 = vmatpush1.msra.mxu0 0.0
        %1023 = vmatprep.subr.mxu0 0.0
        %1024 = vmatpush1.msra.mxu0 0.0
        %1025 = vmatprep.subr.mxu0 0.0
        %1026 = vmatpush1.msra.mxu0 0.0
        %1027 = vmatprep.subr.mxu0 0.0
        %1028 = vmatpush1.msra.mxu0 0.0
        %1029 = vmatprep.subr.mxu0 0.0
        %1030 = vmatpush1.msra.mxu0 0.0
        %1031 = vmatprep.subr.mxu0 0.0
        %1032 = vmatpush1.msra.mxu0 0.0
        %1033 = vmatprep.subr.mxu0 0.0
        %1034 = vmatpush1.msra.mxu0 0.0
        %1035 = vmatprep.subr.mxu0 0.0
        %1036 = vmatpush1.msra.mxu0 0.0
        %1037 = vmatprep.subr.mxu0 0.0
        %1038 = vmatpush1.msra.mxu0 0.0
        %1039 = vmatprep.subr.mxu0 0.0
        %1040 = vmatpush1.msra.mxu0 0.0
        %1041 = vmatprep.subr.mxu0 0.0
        %1042 = vmatpush1.msra.mxu0 0.0
        %1043 = vmatprep.subr.mxu0 0.0
        %1044 = vmatpush1.msra.mxu0 0.0
        %1045 = vmatprep.subr.mxu0 0.0
        %1046 = vmatpush1.msra.mxu0 0.0
        %1047 = vmatprep.subr.mxu0 0.0
        %1048 = vmatpush1.msra.mxu0 0.0
        %1049 = vmatprep.subr.mxu0 0.0
        %1050 = vmatpush1.msra.mxu0 0.0
        %1051 = vmatprep.subr.mxu0 0.0
        %1052 = vmatpush1.msra.mxu0 0.0
        %1053 = vmatprep.mubr.f32.mxu0 0.0
        %1054 = vmatmul.mubr.f32.gmra.mrb[0].mxu0 %v987
        %v1055 = vpop.f32.mrb[0].mxu0
        %v1056 = vadd.f32 %v983, %v1055
        %v1057 = vpop.f32.mrb[0].mxu0
        %1058 = vdwg.mxu0
        %1059 = vrot.lane.b32.xlu0 %v577, 112
        %v1060 = vpop.permute.xlu0 %1059
        %1061 = vrot.lane.b32.xlu0 %v577, 80
        %v1062 = vpop.permute.xlu0 %1061
        %v1063 = vsel %vm583, %v1060, 0
        %v1065 = vsel %vm583, %v1062, 0
        %1067 = vmatprep.subr.mxu0 0.0
        %1068 = vmatpush1.xpose.msra.mxu0 %v1065
        %1069 = vmatprep.subr.mxu0 0.0
        %1070 = vmatpush1.xpose.msra.mxu0 0.0
        %1071 = vmatprep.subr.mxu0 0.0
        %1072 = vmatpush1.xpose.msra.mxu0 0.0
        %1073 = vmatprep.subr.mxu0 0.0
        %1074 = vmatpush1.xpose.msra.mxu0 0.0
        %1075 = vmatprep.subr.mxu0 0.0
        %1076 = vmatpush1.xpose.msra.mxu0 0.0
        %1077 = vmatprep.subr.mxu0 0.0
        %1078 = vmatpush1.xpose.msra.mxu0 0.0
        %1079 = vmatprep.subr.mxu0 0.0
        %1080 = vmatpush1.xpose.msra.mxu0 0.0
        %1081 = vmatprep.subr.mxu0 0.0
        %1082 = vmatpush1.xpose.msra.mxu0 0.0
        %1083 = vmatprep.subr.mxu0 0.0
        %1084 = vmatpush1.xpose.msra.mxu0 0.0
        %1085 = vmatprep.subr.mxu0 0.0
        %1086 = vmatpush1.xpose.msra.mxu0 0.0
        %1087 = vmatprep.subr.mxu0 0.0
        %1088 = vmatpush1.xpose.msra.mxu0 0.0
        %1089 = vmatprep.subr.mxu0 0.0
        %1090 = vmatpush1.xpose.msra.mxu0 0.0
        %1091 = vmatprep.subr.mxu0 0.0
        %1092 = vmatpush1.xpose.msra.mxu0 0.0
        %1093 = vmatprep.subr.mxu0 0.0
        %1094 = vmatpush1.xpose.msra.mxu0 0.0
        %1095 = vmatprep.subr.mxu0 0.0
        %1096 = vmatpush1.xpose.msra.mxu0 0.0
        %1097 = vmatprep.subr.mxu0 0.0
        %1098 = vmatpush1.xpose.msra.mxu0 0.0
        %1099 = vmatprep.subr.mxu0 0.0
        %1100 = vmatpush1.xpose.msra.mxu0 0.0
        %1101 = vmatprep.subr.mxu0 0.0
        %1102 = vmatpush1.xpose.msra.mxu0 0.0
        %1103 = vmatprep.subr.mxu0 0.0
        %1104 = vmatpush1.xpose.msra.mxu0 0.0
        %1105 = vmatprep.subr.mxu0 0.0
        %1106 = vmatpush1.xpose.msra.mxu0 0.0
        %1107 = vmatprep.subr.mxu0 0.0
        %1108 = vmatpush1.xpose.msra.mxu0 0.0
        %1109 = vmatprep.subr.mxu0 0.0
        %1110 = vmatpush1.xpose.msra.mxu0 0.0
        %1111 = vmatprep.subr.mxu0 0.0
        %1112 = vmatpush1.xpose.msra.mxu0 0.0
        %1113 = vmatprep.subr.mxu0 0.0
        %1114 = vmatpush1.xpose.msra.mxu0 0.0
        %1115 = vmatprep.subr.mxu0 0.0
        %1116 = vmatpush1.xpose.msra.mxu0 0.0
        %1117 = vmatprep.subr.mxu0 0.0
        %1118 = vmatpush1.xpose.msra.mxu0 0.0
        %1119 = vmatprep.subr.mxu0 0.0
        %1120 = vmatpush1.xpose.msra.mxu0 0.0
        %1121 = vmatprep.subr.mxu0 0.0
        %1122 = vmatpush1.xpose.msra.mxu0 0.0
        %1123 = vmatprep.subr.mxu0 0.0
        %1124 = vmatpush1.xpose.msra.mxu0 0.0
        %1125 = vmatprep.subr.mxu0 0.0
        %1126 = vmatpush1.xpose.msra.mxu0 0.0
        %1127 = vmatprep.subr.mxu0 0.0
        %1128 = vmatpush1.xpose.msra.mxu0 0.0
        %1129 = vmatprep.subr.mxu0 0.0
        %1130 = vmatpush1.xpose.msra.mxu0 0.0
        %1131 = vmatprep.mubr.f32.mxu0 0.0
        %1132 = vmatmul.mubr.f32.gmra.mrb[0].mxu0 %v1063
        %v1133 = vpop.f32.mrb[0].mxu0
        %v1134 = vadd.f32 %v464, %v1133
        %v1135 = vpop.f32.mrb[0].mxu0
        %1136 = vdwg.mxu0
        %v1137 = vsel %vm583, %v1134, -inf
        %1138 = vmax.xlane.f32.xlu0 %v1137
        %v1139 = vpop.xlane.xlu0 %1138
        %v1140 = vsub.f32 %v1134, %v1139
        %v1141 = vmul.f32 %v1140, 1.442695
        %v1142 = vpow.pop %v1141
        %v1143 = vsel %vm583, %v1142, 0.0
        %1144 = vadd.xlane.f32.xlu0 %v1143
        %v1145 = vpop.xlane.xlu0 %1144
        %v1146 = vrcp.pop %v1145
        %v1147 = vmul.f32 %v1142, %v1146
        %1148 = vrot.lane.b32.xlu0 %v577, 48
        %v1149 = vpop.permute.xlu0 %1148
        %v1152 = vsel %vm583, %v1147, 0
        %1154 = vmatprep.subr.mxu0 0.0
        %1155 = vmatpush1.msra.mxu0 %v1149
        %1156 = vmatprep.subr.mxu0 0.0
        %1157 = vmatpush1.msra.mxu0 0.0
        %1158 = vmatprep.subr.mxu0 0.0
        %1159 = vmatpush1.msra.mxu0 0.0
        %1160 = vmatprep.subr.mxu0 0.0
        %1161 = vmatpush1.msra.mxu0 0.0
        %1162 = vmatprep.subr.mxu0 0.0
        %1163 = vmatpush1.msra.mxu0 0.0
        %1164 = vmatprep.subr.mxu0 0.0
        %1165 = vmatpush1.msra.mxu0 0.0
        %1166 = vmatprep.subr.mxu0 0.0
        %1167 = vmatpush1.msra.mxu0 0.0
        %1168 = vmatprep.subr.mxu0 0.0
        %1169 = vmatpush1.msra.mxu0 0.0
        %1170 = vmatprep.subr.mxu0 0.0
        %1171 = vmatpush1.msra.mxu0 0.0
        %1172 = vmatprep.subr.mxu0 0.0
        %1173 = vmatpush1.msra.mxu0 0.0
        %1174 = vmatprep.subr.mxu0 0.0
        %1175 = vmatpush1.msra.mxu0 0.0
        %1176 = vmatprep.subr.mxu0 0.0
        %1177 = vmatpush1.msra.mxu0 0.0
        %1178 = vmatprep.subr.mxu0 0.0
        %1179 = vmatpush1.msra.mxu0 0.0
        %1180 = vmatprep.subr.mxu0 0.0
        %1181 = vmatpush1.msra.mxu0 0.0
        %1182 = vmatprep.subr.mxu0 0.0
        %1183 = vmatpush1.msra.mxu0 0.0
        %1184 = vmatprep.subr.mxu0 0.0
        %1185 = vmatpush1.msra.mxu0 0.0
        %1186 = vmatprep.subr.mxu0 0.0
        %1187 = vmatpush1.msra.mxu0 0.0
        %1188 = vmatprep.subr.mxu0 0.0
        %1189 = vmatpush1.msra.mxu0 0.0
        %1190 = vmatprep.subr.mxu0 0.0
        %1191 = vmatpush1.msra.mxu0 0.0
        %1192 = vmatprep.subr.mxu0 0.0
        %1193 = vmatpush1.msra.mxu0 0.0
        %1194 = vmatprep.subr.mxu0 0.0
        %1195 = vmatpush1.msra.mxu0 0.0
        %1196 = vmatprep.subr.mxu0 0.0
        %1197 = vmatpush1.msra.mxu0 0.0
        %1198 = vmatprep.subr.mxu0 0.0
        %1199 = vmatpush1.msra.mxu0 0.0
        %1200 = vmatprep.subr.mxu0 0.0
        %1201 = vmatpush1.msra.mxu0 0.0
        %1202 = vmatprep.subr.mxu0 0.0
        %1203 = vmatpush1.msra.mxu0 0.0
        %1204 = vmatprep.subr.mxu0 0.0
        %1205 = vmatpush1.msra.mxu0 0.0
        %1206 = vmatprep.subr.mxu0 0.0
        %1207 = vmatpush1.msra.mxu0 0.0
        %1208 = vmatprep.subr.mxu0 0.0
        %1209 = vmatpush1.msra.mxu0 0.0
        %1210 = vmatprep.subr.mxu0 0.0
        %1211 = vmatpush1.msra.mxu0 0.0
        %1212 = vmatprep.subr.mxu0 0.0
        %1213 = vmatpush1.msra.mxu0 0.0
        %1214 = vmatprep.subr.mxu0 0.0
        %1215 = vmatpush1.msra.mxu0 0.0
        %1216 = vmatprep.subr.mxu0 0.0
        %1217 = vmatpush1.msra.mxu0 0.0
        %1218 = vmatprep.mubr.f32.mxu0 0.0
        %1219 = vmatmul.mubr.f32.gmra.mrb[0].mxu0 %v1152
        %v1220 = vpop.f32.mrb[0].mxu0
        %v1221 = vadd.f32 0.0, %v1220
        %v1222 = vpop.f32.mrb[0].mxu0
        %1223 = vdwg.mxu0
        %s1224 = scalar_lea.vmem %s6, 16
        %v1225 = vld [vmem:[%s1224] sm:$0xff]
        %v1227 = vsel %vm583, %v1221, 0
        %1229 = vmatprep.subr.mxu0 0.0
        %1230 = vmatpush1.msra.mxu0 %v1225
        %1231 = vmatprep.subr.mxu0 0.0
        %1232 = vmatpush1.msra.mxu0 0.0
        %1233 = vmatprep.subr.mxu0 0.0
        %1234 = vmatpush1.msra.mxu0 0.0
        %1235 = vmatprep.subr.mxu0 0.0
        %1236 = vmatpush1.msra.mxu0 0.0
        %1237 = vmatprep.subr.mxu0 0.0
        %1238 = vmatpush1.msra.mxu0 0.0
        %1239 = vmatprep.subr.mxu0 0.0
        %1240 = vmatpush1.msra.mxu0 0.0
        %1241 = vmatprep.subr.mxu0 0.0
        %1242 = vmatpush1.msra.mxu0 0.0
        %1243 = vmatprep.subr.mxu0 0.0
        %1244 = vmatpush1.msra.mxu0 0.0
        %1245 = vmatprep.subr.mxu0 0.0
        %1246 = vmatpush1.msra.mxu0 0.0
        %1247 = vmatprep.subr.mxu0 0.0
        %1248 = vmatpush1.msra.mxu0 0.0
        %1249 = vmatprep.subr.mxu0 0.0
        %1250 = vmatpush1.msra.mxu0 0.0
        %1251 = vmatprep.subr.mxu0 0.0
        %1252 = vmatpush1.msra.mxu0 0.0
        %1253 = vmatprep.subr.mxu0 0.0
        %1254 = vmatpush1.msra.mxu0 0.0
        %1255 = vmatprep.subr.mxu0 0.0
        %1256 = vmatpush1.msra.mxu0 0.0
        %1257 = vmatprep.subr.mxu0 0.0
        %1258 = vmatpush1.msra.mxu0 0.0
        %1259 = vmatprep.subr.mxu0 0.0
        %1260 = vmatpush1.msra.mxu0 0.0
        %1261 = vmatprep.subr.mxu0 0.0
        %1262 = vmatpush1.msra.mxu0 0.0
        %1263 = vmatprep.subr.mxu0 0.0
        %1264 = vmatpush1.msra.mxu0 0.0
        %1265 = vmatprep.subr.mxu0 0.0
        %1266 = vmatpush1.msra.mxu0 0.0
        %1267 = vmatprep.subr.mxu0 0.0
        %1268 = vmatpush1.msra.mxu0 0.0
        %1269 = vmatprep.subr.mxu0 0.0
        %1270 = vmatpush1.msra.mxu0 0.0
        %1271 = vmatprep.subr.mxu0 0.0
        %1272 = vmatpush1.msra.mxu0 0.0
        %1273 = vmatprep.subr.mxu0 0.0
        %1274 = vmatpush1.msra.mxu0 0.0
        %1275 = vmatprep.subr.mxu0 0.0
        %1276 = vmatpush1.msra.mxu0 0.0
        %1277 = vmatprep.subr.mxu0 0.0
        %1278 = vmatpush1.msra.mxu0 0.0
        %1279 = vmatprep.subr.mxu0 0.0
        %1280 = vmatpush1.msra.mxu0 0.0
        %1281 = vmatprep.subr.mxu0 0.0
        %1282 = vmatpush1.msra.mxu0 0.0
        %1283 = vmatprep.subr.mxu0 0.0
        %1284 = vmatpush1.msra.mxu0 0.0
        %1285 = vmatprep.subr.mxu0 0.0
        %1286 = vmatpush1.msra.mxu0 0.0
        %1287 = vmatprep.subr.mxu0 0.0
        %1288 = vmatpush1.msra.mxu0 0.0
        %1289 = vmatprep.subr.mxu0 0.0
        %1290 = vmatpush1.msra.mxu0 0.0
        %1291 = vmatprep.subr.mxu0 0.0
        %1292 = vmatpush1.msra.mxu0 0.0
        %1293 = vmatprep.mubr.f32.mxu0 0.0
        %1294 = vmatmul.mubr.f32.gmra.mrb[0].mxu0 %v1227
        %v1295 = vpop.f32.mrb[0].mxu0
        %v1296 = vadd.f32 0.0, %v1295
        %v1297 = vpop.f32.mrb[0].mxu0
        %1298 = vdwg.mxu0
        %v1299 = vadd.f32 %v1056, %v1296
        %1300 = vrot.lane.b32.xlu0 %v577, 104
        %v1301 = vpop.permute.xlu0 %1300
        %1302 = vrot.lane.b32.xlu0 %v577, 72
        %v1303 = vpop.permute.xlu0 %1302
        %v1304 = vsel %vm583, %v1301, 0
        %v1306 = vsel %vm583, %v1303, 0
        %1308 = vmatprep.subr.mxu0 0.0
        %1309 = vmatpush1.xpose.msra.mxu0 %v1306
        %1310 = vmatprep.subr.mxu0 0.0
        %1311 = vmatpush1.xpose.msra.mxu0 0.0
        %1312 = vmatprep.subr.mxu0 0.0
        %1313 = vmatpush1.xpose.msra.mxu0 0.0
        %1314 = vmatprep.subr.mxu0 0.0
        %1315 = vmatpush1.xpose.msra.mxu0 0.0
        %1316 = vmatprep.subr.mxu0 0.0
        %1317 = vmatpush1.xpose.msra.mxu0 0.0
        %1318 = vmatprep.subr.mxu0 0.0
        %1319 = vmatpush1.xpose.msra.mxu0 0.0
        %1320 = vmatprep.subr.mxu0 0.0
        %1321 = vmatpush1.xpose.msra.mxu0 0.0
        %1322 = vmatprep.subr.mxu0 0.0
        %1323 = vmatpush1.xpose.msra.mxu0 0.0
        %1324 = vmatprep.subr.mxu0 0.0
        %1325 = vmatpush1.xpose.msra.mxu0 0.0
        %1326 = vmatprep.subr.mxu0 0.0
        %1327 = vmatpush1.xpose.msra.mxu0 0.0
        %1328 = vmatprep.subr.mxu0 0.0
        %1329 = vmatpush1.xpose.msra.mxu0 0.0
        %1330 = vmatprep.subr.mxu0 0.0
        %1331 = vmatpush1.xpose.msra.mxu0 0.0
        %1332 = vmatprep.subr.mxu0 0.0
        %1333 = vmatpush1.xpose.msra.mxu0 0.0
        %1334 = vmatprep.subr.mxu0 0.0
        %1335 = vmatpush1.xpose.msra.mxu0 0.0
        %1336 = vmatprep.subr.mxu0 0.0
        %1337 = vmatpush1.xpose.msra.mxu0 0.0
        %1338 = vmatprep.subr.mxu0 0.0
        %1339 = vmatpush1.xpose.msra.mxu0 0.0
        %1340 = vmatprep.subr.mxu0 0.0
        %1341 = vmatpush1.xpose.msra.mxu0 0.0
        %1342 = vmatprep.subr.mxu0 0.0
        %1343 = vmatpush1.xpose.msra.mxu0 0.0
        %1344 = vmatprep.subr.mxu0 0.0
        %1345 = vmatpush1.xpose.msra.mxu0 0.0
        %1346 = vmatprep.subr.mxu0 0.0
        %1347 = vmatpush1.xpose.msra.mxu0 0.0
        %1348 = vmatprep.subr.mxu0 0.0
        %1349 = vmatpush1.xpose.msra.mxu0 0.0
        %1350 = vmatprep.subr.mxu0 0.0
        %1351 = vmatpush1.xpose.msra.mxu0 0.0
        %1352 = vmatprep.subr.mxu0 0.0
        %1353 = vmatpush1.xpose.msra.mxu0 0.0
        %1354 = vmatprep.subr.mxu0 0.0
        %1355 = vmatpush1.xpose.msra.mxu0 0.0
        %1356 = vmatprep.subr.mxu0 0.0
        %1357 = vmatpush1.xpose.msra.mxu0 0.0
        %1358 = vmatprep.subr.mxu0 0.0
        %1359 = vmatpush1.xpose.msra.mxu0 0.0
        %1360 = vmatprep.subr.mxu0 0.0
        %1361 = vmatpush1.xpose.msra.mxu0 0.0
        %1362 = vmatprep.subr.mxu0 0.0
        %1363 = vmatpush1.xpose.msra.mxu0 0.0
        %1364 = vmatprep.subr.mxu0 0.0
        %1365 = vmatpush1.xpose.msra.mxu0 0.0
        %1366 = vmatprep.subr.mxu0 0.0
        %1367 = vmatpush1.xpose.msra.mxu0 0.0
        %1368 = vmatprep.subr.mxu0 0.0
        %1369 = vmatpush1.xpose.msra.mxu0 0.0
        %1370 = vmatprep.subr.mxu0 0.0
        %1371 = vmatpush1.xpose.msra.mxu0 0.0
        %1372 = vmatprep.mubr.f32.mxu0 0.0
        %1373 = vmatmul.mubr.f32.gmra.mrb[0].mxu0 %v1304
        %v1374 = vpop.f32.mrb[0].mxu0
        %v1375 = vadd.f32 %v464, %v1374
        %v1376 = vpop.f32.mrb[0].mxu0
        %1377 = vdwg.mxu0
        %v1378 = vsel %vm583, %v1375, -inf
        %1379 = vmax.xlane.f32.xlu0 %v1378
        %v1380 = vpop.xlane.xlu0 %1379
        %v1381 = vsub.f32 %v1375, %v1380
        %v1382 = vmul.f32 %v1381, 1.442695
        %v1383 = vpow.pop %v1382
        %v1384 = vsel %vm583, %v1383, 0.0
        %1385 = vadd.xlane.f32.xlu0 %v1384
        %v1386 = vpop.xlane.xlu0 %1385
        %v1387 = vrcp.pop %v1386
        %v1388 = vmul.f32 %v1383, %v1387
        %1389 = vrot.lane.b32.xlu0 %v577, 40
        %v1390 = vpop.permute.xlu0 %1389
        %v1393 = vsel %vm583, %v1388, 0
        %1395 = vmatprep.subr.mxu0 0.0
        %1396 = vmatpush1.msra.mxu0 %v1390
        %1397 = vmatprep.subr.mxu0 0.0
        %1398 = vmatpush1.msra.mxu0 0.0
        %1399 = vmatprep.subr.mxu0 0.0
        %1400 = vmatpush1.msra.mxu0 0.0
        %1401 = vmatprep.subr.mxu0 0.0
        %1402 = vmatpush1.msra.mxu0 0.0
        %1403 = vmatprep.subr.mxu0 0.0
        %1404 = vmatpush1.msra.mxu0 0.0
        %1405 = vmatprep.subr.mxu0 0.0
        %1406 = vmatpush1.msra.mxu0 0.0
        %1407 = vmatprep.subr.mxu0 0.0
        %1408 = vmatpush1.msra.mxu0 0.0
        %1409 = vmatprep.subr.mxu0 0.0
        %1410 = vmatpush1.msra.mxu0 0.0
        %1411 = vmatprep.subr.mxu0 0.0
        %1412 = vmatpush1.msra.mxu0 0.0
        %1413 = vmatprep.subr.mxu0 0.0
        %1414 = vmatpush1.msra.mxu0 0.0
        %1415 = vmatprep.subr.mxu0 0.0
        %1416 = vmatpush1.msra.mxu0 0.0
        %1417 = vmatprep.subr.mxu0 0.0
        %1418 = vmatpush1.msra.mxu0 0.0
        %1419 = vmatprep.subr.mxu0 0.0
        %1420 = vmatpush1.msra.mxu0 0.0
        %1421 = vmatprep.subr.mxu0 0.0
        %1422 = vmatpush1.msra.mxu0 0.0
        %1423 = vmatprep.subr.mxu0 0.0
        %1424 = vmatpush1.msra.mxu0 0.0
        %1425 = vmatprep.subr.mxu0 0.0
        %1426 = vmatpush1.msra.mxu0 0.0
        %1427 = vmatprep.subr.mxu0 0.0
        %1428 = vmatpush1.msra.mxu0 0.0
        %1429 = vmatprep.subr.mxu0 0.0
        %1430 = vmatpush1.msra.mxu0 0.0
        %1431 = vmatprep.subr.mxu0 0.0
        %1432 = vmatpush1.msra.mxu0 0.0
        %1433 = vmatprep.subr.mxu0 0.0
        %1434 = vmatpush1.msra.mxu0 0.0
        %1435 = vmatprep.subr.mxu0 0.0
        %1436 = vmatpush1.msra.mxu0 0.0
        %1437 = vmatprep.subr.mxu0 0.0
        %1438 = vmatpush1.msra.mxu0 0.0
        %1439 = vmatprep.subr.mxu0 0.0
        %1440 = vmatpush1.msra.mxu0 0.0
        %1441 = vmatprep.subr.mxu0 0.0
        %1442 = vmatpush1.msra.mxu0 0.0
        %1443 = vmatprep.subr.mxu0 0.0
        %1444 = vmatpush1.msra.mxu0 0.0
        %1445 = vmatprep.subr.mxu0 0.0
        %1446 = vmatpush1.msra.mxu0 0.0
        %1447 = vmatprep.subr.mxu0 0.0
        %1448 = vmatpush1.msra.mxu0 0.0
        %1449 = vmatprep.subr.mxu0 0.0
        %1450 = vmatpush1.msra.mxu0 0.0
        %1451 = vmatprep.subr.mxu0 0.0
        %1452 = vmatpush1.msra.mxu0 0.0
        %1453 = vmatprep.subr.mxu0 0.0
        %1454 = vmatpush1.msra.mxu0 0.0
        %1455 = vmatprep.subr.mxu0 0.0
        %1456 = vmatpush1.msra.mxu0 0.0
        %1457 = vmatprep.subr.mxu0 0.0
        %1458 = vmatpush1.msra.mxu0 0.0
        %1459 = vmatprep.mubr.f32.mxu0 0.0
        %1460 = vmatmul.mubr.f32.gmra.mrb[0].mxu0 %v1393
        %v1461 = vpop.f32.mrb[0].mxu0
        %v1462 = vadd.f32 0.0, %v1461
        %v1463 = vpop.f32.mrb[0].mxu0
        %1464 = vdwg.mxu0
        %s1465 = scalar_lea.vmem %s6, 24
        %v1466 = vld [vmem:[%s1465] sm:$0xff]
        %v1468 = vsel %vm583, %v1462, 0
        %1470 = vmatprep.subr.mxu0 0.0
        %1471 = vmatpush1.msra.mxu0 %v1466
        %1472 = vmatprep.subr.mxu0 0.0
        %1473 = vmatpush1.msra.mxu0 0.0
        %1474 = vmatprep.subr.mxu0 0.0
        %1475 = vmatpush1.msra.mxu0 0.0
        %1476 = vmatprep.subr.mxu0 0.0
        %1477 = vmatpush1.msra.mxu0 0.0
        %1478 = vmatprep.subr.mxu0 0.0
        %1479 = vmatpush1.msra.mxu0 0.0
        %1480 = vmatprep.subr.mxu0 0.0
        %1481 = vmatpush1.msra.mxu0 0.0
        %1482 = vmatprep.subr.mxu0 0.0
        %1483 = vmatpush1.msra.mxu0 0.0
        %1484 = vmatprep.subr.mxu0 0.0
        %1485 = vmatpush1.msra.mxu0 0.0
        %1486 = vmatprep.subr.mxu0 0.0
        %1487 = vmatpush1.msra.mxu0 0.0
        %1488 = vmatprep.subr.mxu0 0.0
        %1489 = vmatpush1.msra.mxu0 0.0
        %1490 = vmatprep.subr.mxu0 0.0
        %1491 = vmatpush1.msra.mxu0 0.0
        %1492 = vmatprep.subr.mxu0 0.0
        %1493 = vmatpush1.msra.mxu0 0.0
        %1494 = vmatprep.subr.mxu0 0.0
        %1495 = vmatpush1.msra.mxu0 0.0
        %1496 = vmatprep.subr.mxu0 0.0
        %1497 = vmatpush1.msra.mxu0 0.0
        %1498 = vmatprep.subr.mxu0 0.0
        %1499 = vmatpush1.msra.mxu0 0.0
        %1500 = vmatprep.subr.mxu0 0.0
        %1501 = vmatpush1.msra.mxu0 0.0
        %1502 = vmatprep.subr.mxu0 0.0
        %1503 = vmatpush1.msra.mxu0 0.0
        %1504 = vmatprep.subr.mxu0 0.0
        %1505 = vmatpush1.msra.mxu0 0.0
        %1506 = vmatprep.subr.mxu0 0.0
        %1507 = vmatpush1.msra.mxu0 0.0
        %1508 = vmatprep.subr.mxu0 0.0
        %1509 = vmatpush1.msra.mxu0 0.0
        %1510 = vmatprep.subr.mxu0 0.0
        %1511 = vmatpush1.msra.mxu0 0.0
        %1512 = vmatprep.subr.mxu0 0.0
        %1513 = vmatpush1.msra.mxu0 0.0
        %1514 = vmatprep.subr.mxu0 0.0
        %1515 = vmatpush1.msra.mxu0 0.0
        %1516 = vmatprep.subr.mxu0 0.0
        %1517 = vmatpush1.msra.mxu0 0.0
        %1518 = vmatprep.subr.mxu0 0.0
        %1519 = vmatpush1.msra.mxu0 0.0
        %1520 = vmatprep.subr.mxu0 0.0
        %1521 = vmatpush1.msra.mxu0 0.0
        %1522 = vmatprep.subr.mxu0 0.0
        %1523 = vmatpush1.msra.mxu0 0.0
        %1524 = vmatprep.subr.mxu0 0.0
        %1525 = vmatpush1.msra.mxu0 0.0
        %1526 = vmatprep.subr.mxu0 0.0
        %1527 = vmatpush1.msra.mxu0 0.0
        %1528 = vmatprep.subr.mxu0 0.0
        %1529 = vmatpush1.msra.mxu0 0.0
        %1530 = vmatprep.subr.mxu0 0.0
        %1531 = vmatpush1.msra.mxu0 0.0
        %1532 = vmatprep.subr.mxu0 0.0
        %1533 = vmatpush1.msra.mxu0 0.0
        %1534 = vmatprep.mubr.f32.mxu0 0.0
        %1535 = vmatmul.mubr.f32.gmra.mrb[0].mxu0 %v1468
        %v1536 = vpop.f32.mrb[0].mxu0
        %v1537 = vadd.f32 0.0, %v1536
        %v1538 = vpop.f32.mrb[0].mxu0
        %1539 = vdwg.mxu0
        %v1540 = vadd.f32 %v1299, %v1537
        %v1541 = vld [vmem:[%s7] sm:$0x1]
        %v1543 = vlaneseq
        %v1544 = vshrl.u32 %v1543, 7
        %v1545 = vsub.s32 0, %v1544
        %v1546 = vrot.slane %v1541, %v1545
        %v1548 = vadd.f32 %v1540, %v1546
        %v1549 = vadd.f32 %v463, %v1548
        %v1550 = vsel %vm465, %v1549, 0.0
        %1551 = vadd.xlane.f32.xlu0 %v1550
        %v1552 = vpop.xlane.xlu0 %1551
        %v1553 = vmul.f32 %v1552, %v469
        %v1554 = vsub.f32 %v1549, %v1553
        %v1555 = vmul.f32 %v1554, %v1554
        %v1556 = vsel %vm465, %v1555, 0.0
        %1557 = vadd.xlane.f32.xlu0 %v1556
        %v1558 = vpop.xlane.xlu0 %1557
        %v1559 = vmul.f32 %v1558, %v469
        %v1560 = vadd.f32 %v1559, 1e-05
        %v1561 = vrsqrt.pop %v1560
        %v1562 = vmul.f32 %v1554, %v1561
        %v1563 = vld [vmem:[%s8] sm:$0x1]
        %v1565 = vlaneseq
        %v1566 = vshrl.u32 %v1565, 7
        %v1567 = vsub.s32 0, %v1566
        %v1568 = vrot.slane %v1563, %v1567
        %v1570 = vmul.f32 %v1562, %v1568
        %v1571 = vld [vmem:[%s9] sm:$0x1]
        %v1573 = vlaneseq
        %v1574 = vshrl.u32 %v1573, 7
        %v1575 = vsub.s32 0, %v1574
        %v1576 = vrot.slane %v1571, %v1575
        %v1578 = vadd.f32 %v1570, %v1576
        %v1579 = vld [vmem:[%s10] sm:$0xff]
        %v1580 = vld [vmem:[%s10 + $0x8] sm:$0xff]
        %v1581 = vld [vmem:[%s10 + $0x10] sm:$0xff]
        %v1582 = vld [vmem:[%s10 + $0x18] sm:$0xff]
        %v1583 = vld [vmem:[%s11] sm:$0x1]
        %v1585 = vlaneseq
        %v1586 = vshrl.u32 %v1585, 7
        %v1587 = vsub.s32 0, %v1586
        %v1588 = vrot.slane %v1583, %v1587
        %v1591 = vsel %vm465, %v1578, 0
        %1593 = vmatprep.subr.mxu0 0.0
        %1594 = vmatpush1.msra.mxu0 %v1579
        %1595 = vmatprep.subr.mxu0 0.0
        %1596 = vmatpush1.msra.mxu0 %v1580
        %1597 = vmatprep.subr.mxu0 0.0
        %1598 = vmatpush1.msra.mxu0 %v1581
        %1599 = vmatprep.subr.mxu0 0.0
        %1600 = vmatpush1.msra.mxu0 %v1582
        %1601 = vmatprep.subr.mxu0 0.0
        %1602 = vmatpush1.msra.mxu0 0.0
        %1603 = vmatprep.subr.mxu0 0.0
        %1604 = vmatpush1.msra.mxu0 0.0
        %1605 = vmatprep.subr.mxu0 0.0
        %1606 = vmatpush1.msra.mxu0 0.0
        %1607 = vmatprep.subr.mxu0 0.0
        %1608 = vmatpush1.msra.mxu0 0.0
        %1609 = vmatprep.subr.mxu0 0.0
        %1610 = vmatpush1.msra.mxu0 0.0
        %1611 = vmatprep.subr.mxu0 0.0
        %1612 = vmatpush1.msra.mxu0 0.0
        %1613 = vmatprep.subr.mxu0 0.0
        %1614 = vmatpush1.msra.mxu0 0.0
        %1615 = vmatprep.subr.mxu0 0.0
        %1616 = vmatpush1.msra.mxu0 0.0
        %1617 = vmatprep.subr.mxu0 0.0
        %1618 = vmatpush1.msra.mxu0 0.0
        %1619 = vmatprep.subr.mxu0 0.0
        %1620 = vmatpush1.msra.mxu0 0.0
        %1621 = vmatprep.subr.mxu0 0.0
        %1622 = vmatpush1.msra.mxu0 0.0
        %1623 = vmatprep.subr.mxu0 0.0
        %1624 = vmatpush1.msra.mxu0 0.0
        %1625 = vmatprep.subr.mxu0 0.0
        %1626 = vmatpush1.msra.mxu0 0.0
        %1627 = vmatprep.subr.mxu0 0.0
        %1628 = vmatpush1.msra.mxu0 0.0
        %1629 = vmatprep.subr.mxu0 0.0
        %1630 = vmatpush1.msra.mxu0 0.0
        %1631 = vmatprep.subr.mxu0 0.0
        %1632 = vmatpush1.msra.mxu0 0.0
        %1633 = vmatprep.subr.mxu0 0.0
        %1634 = vmatpush1.msra.mxu0 0.0
        %1635 = vmatprep.subr.mxu0 0.0
        %1636 = vmatpush1.msra.mxu0 0.0
        %1637 = vmatprep.subr.mxu0 0.0
        %1638 = vmatpush1.msra.mxu0 0.0
        %1639 = vmatprep.subr.mxu0 0.0
        %1640 = vmatpush1.msra.mxu0 0.0
        %1641 = vmatprep.subr.mxu0 0.0
        %1642 = vmatpush1.msra.mxu0 0.0
        %1643 = vmatprep.subr.mxu0 0.0
        %1644 = vmatpush1.msra.mxu0 0.0
        %1645 = vmatprep.subr.mxu0 0.0
        %1646 = vmatpush1.msra.mxu0 0.0
        %1647 = vmatprep.subr.mxu0 0.0
        %1648 = vmatpush1.msra.mxu0 0.0
        %1649 = vmatprep.subr.mxu0 0.0
        %1650 = vmatpush1.msra.mxu0 0.0
        %1651 = vmatprep.subr.mxu0 0.0
        %1652 = vmatpush1.msra.mxu0 0.0
        %1653 = vmatprep.subr.mxu0 0.0
        %1654 = vmatpush1.msra.mxu0 0.0
        %1655 = vmatprep.subr.mxu0 0.0
        %1656 = vmatpush1.msra.mxu0 0.0
        %1657 = vmatprep.mubr.f32.mxu0 0.0
        %1658 = vmatmul.mubr.f32.gmra.mrb[0].mxu0 %v1591
        %v1659 = vpop.f32.mrb[0].mxu0
        %v1660 = vadd.f32 %v1588, %v1659
        %v1661 = vpop.f32.mrb[0].mxu0
        %1662 = vdwg.mxu0
        %v1663 = vmax.f32 %v1660, 0.0
        %v1664 = vld [vmem:[%s12] sm:$0xff]
        %v1665 = vld [vmem:[%s12 + $0x8] sm:$0xff]
        %v1666 = vld [vmem:[%s12 + $0x10] sm:$0xff]
        %v1667 = vld [vmem:[%s12 + $0x18] sm:$0xff]
        %v1668 = vld [vmem:[%s12 + $0x20] sm:$0xff]
        %v1669 = vld [vmem:[%s12 + $0x28] sm:$0xff]
        %v1670 = vld [vmem:[%s12 + $0x30] sm:$0xff]
        %v1671 = vld [vmem:[%s12 + $0x38] sm:$0xff]
        %v1672 = vld [vmem:[%s12 + $0x40] sm:$0xff]
        %v1673 = vld [vmem:[%s12 + $0x48] sm:$0xff]
        %v1674 = vld [vmem:[%s12 + $0x50] sm:$0xff]
        %v1675 = vld [vmem:[%s12 + $0x58] sm:$0xff]
        %v1676 = vld [vmem:[%s12 + $0x60] sm:$0xff]
        %v1677 = vld [vmem:[%s12 + $0x68] sm:$0xff]
        %v1678 = vld [vmem:[%s12 + $0x70] sm:$0xff]
        %v1679 = vld [vmem:[%s12 + $0x78] sm:$0xff]
        %v1680 = vld [vmem:[%s13] sm:$0x1]
        %v1682 = vlaneseq
        %v1683 = vshrl.u32 %v1682, 7
        %v1684 = vsub.s32 0, %v1683
        %v1685 = vrot.slane %v1680, %v1684
        %1687 = vmatprep.subr.mxu0 0.0
        %1688 = vmatpush1.msra.mxu0 %v1664
        %1689 = vmatprep.subr.mxu0 0.0
        %1690 = vmatpush1.msra.mxu0 %v1665
        %1691 = vmatprep.subr.mxu0 0.0
        %1692 = vmatpush1.msra.mxu0 %v1666
        %1693 = vmatprep.subr.mxu0 0.0
        %1694 = vmatpush1.msra.mxu0 %v1667
        %1695 = vmatprep.subr.mxu0 0.0
        %1696 = vmatpush1.msra.mxu0 %v1668
        %1697 = vmatprep.subr.mxu0 0.0
        %1698 = vmatpush1.msra.mxu0 %v1669
        %1699 = vmatprep.subr.mxu0 0.0
        %1700 = vmatpush1.msra.mxu0 %v1670
        %1701 = vmatprep.subr.mxu0 0.0
        %1702 = vmatpush1.msra.mxu0 %v1671
        %1703 = vmatprep.subr.mxu0 0.0
        %1704 = vmatpush1.msra.mxu0 %v1672
        %1705 = vmatprep.subr.mxu0 0.0
        %1706 = vmatpush1.msra.mxu0 %v1673
        %1707 = vmatprep.subr.mxu0 0.0
        %1708 = vmatpush1.msra.mxu0 %v1674
        %1709 = vmatprep.subr.mxu0 0.0
        %1710 = vmatpush1.msra.mxu0 %v1675
        %1711 = vmatprep.subr.mxu0 0.0
        %1712 = vmatpush1.msra.mxu0 %v1676
        %1713 = vmatprep.subr.mxu0 0.0
        %1714 = vmatpush1.msra.mxu0 %v1677
        %1715 = vmatprep.subr.mxu0 0.0
        %1716 = vmatpush1.msra.mxu0 %v1678
        %1717 = vmatprep.subr.mxu0 0.0
        %1718 = vmatpush1.msra.mxu0 %v1679
        %1719 = vmatprep.subr.mxu0 0.0
        %1720 = vmatpush1.msra.mxu0 0.0
        %1721 = vmatprep.subr.mxu0 0.0
        %1722 = vmatpush1.msra.mxu0 0.0
        %1723 = vmatprep.subr.mxu0 0.0
        %1724 = vmatpush1.msra.mxu0 0.0
        %1725 = vmatprep.subr.mxu0 0.0
        %1726 = vmatpush1.msra.mxu0 0.0
        %1727 = vmatprep.subr.mxu0 0.0
        %1728 = vmatpush1.msra.mxu0 0.0
        %1729 = vmatprep.subr.mxu0 0.0
        %1730 = vmatpush1.msra.mxu0 0.0
        %1731 = vmatprep.subr.mxu0 0.0
        %1732 = vmatpush1.msra.mxu0 0.0
        %1733 = vmatprep.subr.mxu0 0.0
        %1734 = vmatpush1.msra.mxu0 0.0
        %1735 = vmatprep.subr.mxu0 0.0
        %1736 = vmatpush1.msra.mxu0 0.0
        %1737 = vmatprep.subr.mxu0 0.0
        %1738 = vmatpush1.msra.mxu0 0.0
        %1739 = vmatprep.subr.mxu0 0.0
        %1740 = vmatpush1.msra.mxu0 0.0
        %1741 = vmatprep.subr.mxu0 0.0
        %1742 = vmatpush1.msra.mxu0 0.0
        %1743 = vmatprep.subr.mxu0 0.0
        %1744 = vmatpush1.msra.mxu0 0.0
        %1745 = vmatprep.subr.mxu0 0.0
        %1746 = vmatpush1.msra.mxu0 0.0
        %1747 = vmatprep.subr.mxu0 0.0
        %1748 = vmatpush1.msra.mxu0 0.0
        %1749 = vmatprep.subr.mxu0 0.0
        %1750 = vmatpush1.msra.mxu0 0.0
        %1751 = vmatprep.mubr.f32.mxu0 0.0
        %1752 = vmatmul.mubr.f32.gmra.mrb[0].mxu0 %v1663
        %v1753 = vpop.f32.mrb[0].mxu0
        %v1754 = vadd.f32 %v1685, %v1753
        %v1755 = vpop.f32.mrb[0].mxu0
        %1756 = vdwg.mxu0
        %v1757 = vadd.f32 %v1549, %v1754
        %1758 = vst.msk [vmem:[%s458] sm:$0xff] %vm465, %v1757
        %s1759 = sand.u32 %s335, 1
        %s1760 = scalar_lea.sflag [#allocation3], %s1759
        %s1761 = sand.u32 %s335, 1
        %s1762 = smul.addr %s1761, 8
        %s1763 = scalar_lea.vmem [#allocation2], %s1762
        // Predicated region
        $region77: #{tpu_custom_call.1} parent=75 // pred_check
          %p1764 = pneg %p345
        $region78: #{tpu_custom_call.1} parent=75 // pred_check_branch
          %1766 = sbr.rel (%p1764) target = $region80
        $region79: #{tpu_custom_call.1} parent=75 // pred_region
          %s1768 = ssub.s32 128, 128
          %1769 = vsyncadd %s1760, %s1768
          %s1770 = smul.addr %s28, 128
          %s1771 = scalar_lea.hbm %s14, %s1770
          %s1773 = sshll.u32 %s1763, 4
          %s1774 = int_to_ptr.vmem [resolvable:$true] %s1773
          %1776 = dma.vmem_to_hbm [thread:$0]  %s1774, 128, %s1771, %s1760
        $region80: #{tpu_custom_call.1} parent=75 // pred_fallthru
          _
      $region76: #{tpu_custom_call.1} parent=5 // pred_fallthru
        _
      %p1777 = scmp.le.s32.totalorder 2, %s23
      // Predicated region
      $region81: #{tpu_custom_call.1} parent=5 // pred_check
        %p1778 = pneg %p1777
      $region82: #{tpu_custom_call.1} parent=5 // pred_check_branch
        %1780 = sbr.rel (%p1778) target = $region84
      $region83: #{tpu_custom_call.1} parent=5 // pred_region
        %s1781 = ssub.s32 %s23, 2
        // Predicated region
        $region85: #{tpu_custom_call.1} parent=83 // pred_check
          %p1782 = pneg %p351
        $region86: #{tpu_custom_call.1} parent=83 // pred_check_branch
          %1784 = sbr.rel (%p1782) target = $region88
        $region87: #{tpu_custom_call.1} parent=83 // pred_region
          %s1785 = sand.u32 %s336, 1
          %s1786 = scalar_lea.sflag [#allocation3], %s1785
          %s1787 = sand.u32 %s336, 1
          %s1788 = smul.addr %s1787, 8
          %s1789 = scalar_lea.vmem [#allocation2], %s1788
          %1790 = dma.done %s1786, 128
        $region88: #{tpu_custom_call.1} parent=83 // pred_fallthru
          _
      $region84: #{tpu_custom_call.1} parent=5 // pred_fallthru
        _
    $region6: #{tpu_custom_call.1} parent=1 // loop_footer
      %s27 = sadd.s32 1, %s23
    $region7: #{tpu_custom_call.1} parent=1 // loop_footer_branch
      %22 = sbr.rel target = $region3
    $region8: #{tpu_custom_call.1} parent=1 // loop_exit
      _
    %1791 = vsyncpa [#allocation3], 1
    %s1792 = scalar_lea.sflag [#allocation3], 1
    %1793 = vsyncpa %s1792, 1

</llo_original>
